<compile_context>
chip_gen: v7x
topology: tpu7x:2x2x1
jax: 0.10.0
libtpu: 0.0.40
codegen_flags: <defaults>
</compile_context>

<pallas_src>
import functools

import jax
import jax.numpy as jnp
from jax.experimental import pallas as pl
from jax.experimental.pallas import tpu as pltpu


def _round_up(x, m):
    return ((x + m - 1) // m) * m


def _tpu_kind():
    try:
        return (jax.devices()[0].device_kind or "").lower()
    except Exception:
        return ""


def fasterkan_fused_kernel(x_ref, *refs, layer_specs, eps, compute_dtype):
    """refs = [gb_0, grid_row_0, w_0, ..., gb_{L-1}, grid_row_{L-1}, w_{L-1}, o_ref]."""
    o_ref = refs[-1]
    x = x_ref[...].astype(jnp.float32)                        # (bm, D_pad0)

    for li, (D, D_pad, G, O, O_pad) in enumerate(layer_specs):
        gb_ref = refs[3 * li + 0]                             # (2, D_pad)       f32
        gr_ref = refs[3 * li + 1]                             # (1, G*D_pad)     f32
        w_ref = refs[3 * li + 2]                              # (G*D_pad, O_pad) bf16

        # --- LayerNorm over the TRUE feature dim D (pad lanes are exactly 0,
        #     so plain sums / D give the correct mean and E[x^2]) ---
        inv_d = 1.0 / D
        mean = jnp.sum(x, axis=-1, keepdims=True) * inv_d
        ex2 = jnp.sum(x * x, axis=-1, keepdims=True) * inv_d
        var = ex2 - mean * mean
        gb = gb_ref[...]
        # gamma/beta are zero on pad lanes -> xn pad lanes stay exactly zero.
        xn = (x - mean) * jax.lax.rsqrt(var + eps) * gb[0:1, :] + gb[1:2, :]

        # --- RSWAF basis for all grid points at once (g-major lane layout).
        #     bf16 slab on v6e/v7x (half vregs, bf16 EUP tanh); f32 on v5e. ---
        xn_c = xn.astype(compute_dtype)
        xr = jnp.concatenate([xn_c] * G, axis=-1)             # (bm, G*D_pad)
        t = jnp.tanh(xr - gr_ref[...].astype(compute_dtype))
        basis = (1.0 - t * t).astype(jnp.bfloat16)            # sech^2 in (0, 1]

        # --- SplineLinear: one contraction-dense MXU matmul, f32 accumulate.
        #     Carry the full lane-dense (bm, O_pad) slab to the next layer
        #     (weight pad rows/cols are zero, so pad lanes of x stay zero). ---
        x = jnp.dot(basis, w_ref[...], preferred_element_type=jnp.float32)

    o_ref[...] = x.astype(o_ref.dtype)


def _pick_batch_tiling(B, target_bm, split_for_two_cores):
    """Balanced batch tiles: bm a multiple of 16 (bf16 MXU LHS tile), last tile
    not mostly padding, >=2 tiles only on v7x and only when each half >=128."""
    B16 = _round_up(max(B, 1), 16)
    target = max(16, _round_up(min(target_bm, B16), 16))
    n_tiles = -(-B16 // target)
    if split_for_two_cores and n_tiles == 1 and B16 >= 256:
        n_tiles = 2
    bm = _round_up(-(-B16 // n_tiles), 16)
    return bm, bm * n_tiles


def fasterkan_forward(x, params, *, block_batch=512, eps=1e-5,
                      compute_dtype=None, out_dtype=jnp.bfloat16):
    """x: (B, D0) f32. params: list of per-layer dicts from make_fasterkan_params."""
    B, D0 = x.shape
    layer_specs = tuple(p["spec"] for p in params)
    assert layer_specs[0][0] == D0
    D0_pad = layer_specs[0][1]
    O_last, O_pad_last = layer_specs[-1][3], layer_specs[-1][4]

    kind = _tpu_kind()
    is_v7x = "v7" in kind
    if compute_dtype is None:
        # v5e has no bf16 VPU/EUP path; keep the tanh slab in f32 there.
        compute_dtype = jnp.float32 if "v5" in kind else jnp.bfloat16

    bm, B_pad = _pick_batch_tiling(B, block_batch, split_for_two_cores=is_v7x)
    x = jnp.pad(x, ((0, B_pad - B), (0, D0_pad - D0)))
    grid = (B_pad // bm,)

    in_specs = [pl.BlockSpec((bm, D0_pad), lambda i: (i, 0))]
    inputs = [x]
    param_bytes = 0
    flops = 0
    transcendentals = 0
    for p in params:
        D, D_pad, G, O, O_pad = p["spec"]
        in_specs.append(pl.BlockSpec((2, D_pad), lambda i: (0, 0)))          # gamma/beta
        in_specs.append(pl.BlockSpec((1, G * D_pad), lambda i: (0, 0)))      # tiled grid
        in_specs.append(pl.BlockSpec((G * D_pad, O_pad), lambda i: (0, 0)))  # spline W
        inputs.extend([p["gb"], p["grid_row"], p["w"]])
        param_bytes += 2 * D_pad * 4 + G * D_pad * 4 + G * D_pad * O_pad * 2
        flops += 2 * B_pad * G * D_pad * O_pad
        transcendentals += B_pad * G * D_pad

    out_itemsize = jnp.dtype(out_dtype).itemsize
    io_bytes = B_pad * D0_pad * 4 + B_pad * O_pad_last * out_itemsize
    cost = pl.CostEstimate(flops=flops, transcendentals=transcendentals,
                           bytes_accessed=io_bytes + param_bytes)

    # Resident weights + double-buffered batch tiles (generous, capped well
    # under v7x's 64 MiB per-TC VMEM).
    vmem_need = 2 * (param_bytes + bm * D0_pad * 4 + bm * O_pad_last * out_itemsize)
    vmem_limit = int(max(32 << 20, min(vmem_need + (8 << 20), 64 << 20)))

    kernel = functools.partial(fasterkan_fused_kernel, layer_specs=layer_specs,
                               eps=eps, compute_dtype=compute_dtype)
    out = pl.pallas_call(
        kernel,
        out_shape=jax.ShapeDtypeStruct((B_pad, O_pad_last), out_dtype),
        grid=grid,
        in_specs=in_specs,
        out_specs=pl.BlockSpec((bm, O_pad_last), lambda i: (i, 0)),
        compiler_params=pltpu.CompilerParams(
            dimension_semantics=("parallel",),
            vmem_limit_bytes=vmem_limit),
        cost_estimate=cost,
    )(*inputs)
    return out[:B, :O_last].astype(jnp.float32)


def make_fasterkan_params(key, layers_hidden, num_grids, grid_vals):
    """Deterministic init matching the torch module, laid out for the kernel.

    kernel_params[l]: dict with
      spec      = (D, D_pad, G, O, O_pad)          (D_pad/O_pad = round_up(..,128))
      gb        = (2, D_pad)  f32   [gamma; beta], zero on pad lanes
      grid_row  = (1, G*D_pad) f32  grid_row[0, g*D_pad + d] = grid[g]
      w         = (G*D_pad, O_pad) bf16, w[g*D_pad + d, o] = W_torch[o, d*G + g],
                  zero rows for pad-d and zero columns for pad-o
    reference_params[l]: (gamma (D,), beta (D,), W_torch (O, D*G) f32)
    """
    G = num_grids
    params, ref_params = [], []
    keys = jax.random.split(key, len(layers_hidden) - 1)
    for k, (din, dout) in zip(keys, zip(layers_hidden[:-1], layers_hidden[1:])):
        D_pad = _round_up(din, 128)
        O_pad = _round_up(dout, 128)
        fan_in = din * G
        bound = (6.0 / (fan_in + dout)) ** 0.5                # xavier_uniform_
        w_pt = jax.random.uniform(k, (dout, fan_in), minval=-bound,
                                  maxval=bound, dtype=jnp.float32)
        # torch layout (O, D*G) with basis flattened d-major (idx = d*G + g).
        w3 = jnp.transpose(w_pt.reshape(dout, din, G), (2, 1, 0))        # (G, D, O)
        w3 = jnp.pad(w3, ((0, 0), (0, D_pad - din), (0, O_pad - dout)))
        w2d = w3.reshape(G * D_pad, O_pad).astype(jnp.bfloat16)

        gamma = jnp.ones((din,), jnp.float32)                 # LayerNorm weight
        beta = jnp.zeros((din,), jnp.float32)                 # LayerNorm bias
        gb = jnp.stack([jnp.pad(gamma, (0, D_pad - din)),
                        jnp.pad(beta, (0, D_pad - din))], axis=0)        # (2, D_pad)

        grid_row = jnp.repeat(grid_vals.astype(jnp.float32), D_pad)[None, :]

        params.append(dict(spec=(din, D_pad, G, dout, O_pad), gb=gb,
                           grid_row=grid_row, w=w2d))
        ref_params.append((gamma, beta, w_pt))
    return params, ref_params


def fasterkan_reference(x, grid_vals, ref_params, *, eps=1e-5):
    """Pure-JAX f32 reference with the exact torch-forward semantics."""
    for gamma, beta, w_pt in ref_params:
        mean = x.mean(-1, keepdims=True)
        var = ((x - mean) ** 2).mean(-1, keepdims=True)
        xn = (x - mean) / jnp.sqrt(var + eps) * gamma + beta
        t = jnp.tanh(xn[..., None] - grid_vals)               # (B, D, G)
        basis = 1.0 - t * t
        x = basis.reshape(x.shape[0], -1) @ w_pt.T
    return x


if __name__ == "__main__":
    key = jax.random.PRNGKey(0)
    kx, kp = jax.random.split(key)

    layers_hidden = [32, 64, 32]
    B = 8
    num_grids = 8
    grid_min, grid_max = -1.2, 0.2

    grid_vals = jnp.linspace(grid_min, grid_max, num_grids, dtype=jnp.float32)
    params, ref_params = make_fasterkan_params(kp, layers_hidden, num_grids, grid_vals)
    x = jax.random.normal(kx, (B, layers_hidden[0]), dtype=jnp.float32)

    out = fasterkan_forward(x, params)
    jax.block_until_ready(out)
    assert out.shape == (B, layers_hidden[-1])

    ref = fasterkan_reference(x, grid_vals, ref_params)
    max_err = float(jnp.max(jnp.abs(out - ref)))
    # Activation / matmul operands and the output stream are bf16 (LayerNorm and
    # the MXU accumulate stay f32), so the bound is scale-relative.
    tol = 5e-2 * max(1.0, float(jnp.max(jnp.abs(ref))))
    assert max_err < tol, f"max abs err vs f32 reference: {max_err} (tol {tol})"
    print("KERNEL_OK")
</pallas_src>

<mosaic_0001>
module attributes {stable_mosaic.version = 11 : i64} {
  func.func @fasterkan_fused_kernel(%arg0: i32, %arg1: memref<16x128xf32, #tpu.memory_space<vmem>>, %arg2: memref<2x128xf32, #tpu.memory_space<vmem>>, %arg3: memref<1x1024xf32, #tpu.memory_space<vmem>>, %arg4: memref<1024x128xbf16, #tpu.memory_space<vmem>>, %arg5: memref<2x128xf32, #tpu.memory_space<vmem>>, %arg6: memref<1x1024xf32, #tpu.memory_space<vmem>>, %arg7: memref<1024x128xbf16, #tpu.memory_space<vmem>>, %arg8: memref<16x128xbf16, #tpu.memory_space<vmem>>) attributes {dimension_semantics = [#tpu.dimension_semantics<parallel>], iteration_bounds = array<i64: 1>, scalar_prefetch = 0 : i64, scratch_operands = 0 : i64, tpu.core_type = #tpu.core_type<tc>, window_params = [{transform_indices = @transform_0, window_bounds = array<i64: 16, 128>}, {pipeline_mode = #tpu.pipeline_mode<synchronous>, transform_indices = @transform_1, window_bounds = array<i64: 2, 128>}, {pipeline_mode = #tpu.pipeline_mode<synchronous>, transform_indices = @transform_2, window_bounds = array<i64: 1, 1024>}, {pipeline_mode = #tpu.pipeline_mode<synchronous>, transform_indices = @transform_3, window_bounds = array<i64: 1024, 128>}, {pipeline_mode = #tpu.pipeline_mode<synchronous>, transform_indices = @transform_4, window_bounds = array<i64: 2, 128>}, {pipeline_mode = #tpu.pipeline_mode<synchronous>, transform_indices = @transform_5, window_bounds = array<i64: 1, 1024>}, {pipeline_mode = #tpu.pipeline_mode<synchronous>, transform_indices = @transform_6, window_bounds = array<i64: 1024, 128>}, {transform_indices = @transform_7, window_bounds = array<i64: 16, 128>}]} {
    %c0 = arith.constant 0 : index
    %c0_0 = arith.constant 0 : index
    %0 = vector.load %arg1[%c0, %c0_0] : memref<16x128xf32, #tpu.memory_space<vmem>>, vector<16x128xf32>
    %cst = arith.constant dense<0.000000e+00> : vector<16xf32>
    %1 = vector.multi_reduction <add>, %0, %cst [1] : vector<16x128xf32> to vector<16xf32>
    %2 = vector.shape_cast %1 : vector<16xf32> to vector<16x1xf32>
    %cst_1 = arith.constant 3.125000e-02 : f32
    %3 = vector.broadcast %cst_1 : f32 to vector<16x1xf32>
    %4 = arith.mulf %2, %3 : vector<16x1xf32>
    %5 = arith.mulf %0, %0 : vector<16x128xf32>
    %cst_2 = arith.constant dense<0.000000e+00> : vector<16xf32>
    %6 = vector.multi_reduction <add>, %5, %cst_2 [1] : vector<16x128xf32> to vector<16xf32>
    %7 = vector.shape_cast %6 : vector<16xf32> to vector<16x1xf32>
    %cst_3 = arith.constant 3.125000e-02 : f32
    %8 = vector.broadcast %cst_3 : f32 to vector<16x1xf32>
    %9 = arith.mulf %7, %8 : vector<16x1xf32>
    %10 = arith.mulf %4, %4 : vector<16x1xf32>
    %11 = arith.subf %9, %10 : vector<16x1xf32>
    %c0_4 = arith.constant 0 : index
    %c0_5 = arith.constant 0 : index
    %12 = vector.load %arg2[%c0_4, %c0_5] : memref<2x128xf32, #tpu.memory_space<vmem>>, vector<2x128xf32>
    %13 = vector.broadcast %4 : vector<16x1xf32> to vector<16x128xf32>
    %14 = arith.subf %0, %13 : vector<16x128xf32>
    %cst_6 = arith.constant 9.99999974E-6 : f32
    %15 = vector.broadcast %cst_6 : f32 to vector<16x1xf32>
    %16 = arith.addf %11, %15 : vector<16x1xf32>
    %17 = math.rsqrt %16 : vector<16x1xf32>
    %18 = vector.broadcast %17 : vector<16x1xf32> to vector<16x128xf32>
    %19 = arith.mulf %14, %18 : vector<16x128xf32>
    %20 = vector.extract_strided_slice %12 {offsets = [0, 0], sizes = [1, 128], strides = [1, 1]} : vector<2x128xf32> to vector<1x128xf32>
    %21 = vector.broadcast %20 : vector<1x128xf32> to vector<16x128xf32>
    %22 = arith.mulf %19, %21 : vector<16x128xf32>
    %23 = vector.extract_strided_slice %12 {offsets = [1, 0], sizes = [1, 128], strides = [1, 1]} : vector<2x128xf32> to vector<1x128xf32>
    %24 = vector.broadcast %23 : vector<1x128xf32> to vector<16x128xf32>
    %25 = arith.addf %22, %24 : vector<16x128xf32>
    %26 = arith.truncf %25 : vector<16x128xf32> to vector<16x128xbf16>
    %27 = tpu.concatenate %26, %26, %26, %26, %26, %26, %26, %26 in 1 : vector<16x128xbf16>, vector<16x128xbf16>, vector<16x128xbf16>, vector<16x128xbf16>, vector<16x128xbf16>, vector<16x128xbf16>, vector<16x128xbf16>, vector<16x128xbf16> -> vector<16x1024xbf16>
    %c0_7 = arith.constant 0 : index
    %c0_8 = arith.constant 0 : index
    %28 = vector.load %arg3[%c0_7, %c0_8] : memref<1x1024xf32, #tpu.memory_space<vmem>>, vector<1x1024xf32>
    %29 = arith.truncf %28 : vector<1x1024xf32> to vector<1x1024xbf16>
    %30 = vector.broadcast %29 : vector<1x1024xbf16> to vector<16x1024xbf16>
    %31 = arith.subf %27, %30 : vector<16x1024xbf16>
    %32 = math.tanh %31 : vector<16x1024xbf16>
    %33 = arith.mulf %32, %32 : vector<16x1024xbf16>
    %cst_9 = arith.constant 1.000000e+00 : bf16
    %34 = vector.broadcast %cst_9 : bf16 to vector<16x1024xbf16>
    %35 = arith.subf %34, %33 : vector<16x1024xbf16>
    %c0_10 = arith.constant 0 : index
    %c0_11 = arith.constant 0 : index
    %36 = vector.load %arg4[%c0_10, %c0_11] : memref<1024x128xbf16, #tpu.memory_space<vmem>>, vector<1024x128xbf16>
    %cst_12 = arith.constant dense<0.000000e+00> : vector<16x128xf32>
    %37 = tpu.matmul %35, %36, %cst_12 {dimension_numbers = #tpu.dot_dimension_numbers<[1], [0], [0], [1], [0, 0, 1, 1], [], []>} : vector<16x1024xbf16>, vector<1024x128xbf16>, vector<16x128xf32> -> vector<16x128xf32>
    %cst_13 = arith.constant dense<0.000000e+00> : vector<16xf32>
    %38 = vector.multi_reduction <add>, %37, %cst_13 [1] : vector<16x128xf32> to vector<16xf32>
    %39 = vector.shape_cast %38 : vector<16xf32> to vector<16x1xf32>
    %cst_14 = arith.constant 1.562500e-02 : f32
    %40 = vector.broadcast %cst_14 : f32 to vector<16x1xf32>
    %41 = arith.mulf %39, %40 : vector<16x1xf32>
    %42 = arith.mulf %37, %37 : vector<16x128xf32>
    %cst_15 = arith.constant dense<0.000000e+00> : vector<16xf32>
    %43 = vector.multi_reduction <add>, %42, %cst_15 [1] : vector<16x128xf32> to vector<16xf32>
    %44 = vector.shape_cast %43 : vector<16xf32> to vector<16x1xf32>
    %cst_16 = arith.constant 1.562500e-02 : f32
    %45 = vector.broadcast %cst_16 : f32 to vector<16x1xf32>
    %46 = arith.mulf %44, %45 : vector<16x1xf32>
    %47 = arith.mulf %41, %41 : vector<16x1xf32>
    %48 = arith.subf %46, %47 : vector<16x1xf32>
    %c0_17 = arith.constant 0 : index
    %c0_18 = arith.constant 0 : index
    %49 = vector.load %arg5[%c0_17, %c0_18] : memref<2x128xf32, #tpu.memory_space<vmem>>, vector<2x128xf32>
    %50 = vector.broadcast %41 : vector<16x1xf32> to vector<16x128xf32>
    %51 = arith.subf %37, %50 : vector<16x128xf32>
    %cst_19 = arith.constant 9.99999974E-6 : f32
    %52 = vector.broadcast %cst_19 : f32 to vector<16x1xf32>
    %53 = arith.addf %48, %52 : vector<16x1xf32>
    %54 = math.rsqrt %53 : vector<16x1xf32>
    %55 = vector.broadcast %54 : vector<16x1xf32> to vector<16x128xf32>
    %56 = arith.mulf %51, %55 : vector<16x128xf32>
    %57 = vector.extract_strided_slice %49 {offsets = [0, 0], sizes = [1, 128], strides = [1, 1]} : vector<2x128xf32> to vector<1x128xf32>
    %58 = vector.broadcast %57 : vector<1x128xf32> to vector<16x128xf32>
    %59 = arith.mulf %56, %58 : vector<16x128xf32>
    %60 = vector.extract_strided_slice %49 {offsets = [1, 0], sizes = [1, 128], strides = [1, 1]} : vector<2x128xf32> to vector<1x128xf32>
    %61 = vector.broadcast %60 : vector<1x128xf32> to vector<16x128xf32>
    %62 = arith.addf %59, %61 : vector<16x128xf32>
    %63 = arith.truncf %62 : vector<16x128xf32> to vector<16x128xbf16>
    %64 = tpu.concatenate %63, %63, %63, %63, %63, %63, %63, %63 in 1 : vector<16x128xbf16>, vector<16x128xbf16>, vector<16x128xbf16>, vector<16x128xbf16>, vector<16x128xbf16>, vector<16x128xbf16>, vector<16x128xbf16>, vector<16x128xbf16> -> vector<16x1024xbf16>
    %c0_20 = arith.constant 0 : index
    %c0_21 = arith.constant 0 : index
    %65 = vector.load %arg6[%c0_20, %c0_21] : memref<1x1024xf32, #tpu.memory_space<vmem>>, vector<1x1024xf32>
    %66 = arith.truncf %65 : vector<1x1024xf32> to vector<1x1024xbf16>
    %67 = vector.broadcast %66 : vector<1x1024xbf16> to vector<16x1024xbf16>
    %68 = arith.subf %64, %67 : vector<16x1024xbf16>
    %69 = math.tanh %68 : vector<16x1024xbf16>
    %70 = arith.mulf %69, %69 : vector<16x1024xbf16>
    %cst_22 = arith.constant 1.000000e+00 : bf16
    %71 = vector.broadcast %cst_22 : bf16 to vector<16x1024xbf16>
    %72 = arith.subf %71, %70 : vector<16x1024xbf16>
    %c0_23 = arith.constant 0 : index
    %c0_24 = arith.constant 0 : index
    %73 = vector.load %arg7[%c0_23, %c0_24] : memref<1024x128xbf16, #tpu.memory_space<vmem>>, vector<1024x128xbf16>
    %cst_25 = arith.constant dense<0.000000e+00> : vector<16x128xf32>
    %74 = tpu.matmul %72, %73, %cst_25 {dimension_numbers = #tpu.dot_dimension_numbers<[1], [0], [0], [1], [0, 0, 1, 1], [], []>} : vector<16x1024xbf16>, vector<1024x128xbf16>, vector<16x128xf32> -> vector<16x128xf32>
    %75 = arith.truncf %74 : vector<16x128xf32> to vector<16x128xbf16>
    %c0_26 = arith.constant 0 : index
    %c0_27 = arith.constant 0 : index
    %76 = vector.load %arg8[%c0_26, %c0_27] : memref<16x128xbf16, #tpu.memory_space<vmem>>, vector<16x128xbf16>
    tpu.vector_store %arg8[%c0_26, %c0_27], %75 {strides = array<i32>} : memref<16x128xbf16, #tpu.memory_space<vmem>>, vector<16x128xbf16>,
    return
  }
  func.func @transform_0(%arg0: i32) -> (i32, i32) {
    %c0_i32 = arith.constant 0 : i32
    %c0_i32_0 = arith.constant 0 : i32
    return %arg0, %c0_i32 : i32, i32
  }
  func.func @transform_1(%arg0: i32) -> (i32, i32) {
    %c0_i32 = arith.constant 0 : i32
    %c0_i32_0 = arith.constant 0 : i32
    %c0_i32_1 = arith.constant 0 : i32
    return %c0_i32, %c0_i32_0 : i32, i32
  }
  func.func @transform_2(%arg0: i32) -> (i32, i32) {
    %c0_i32 = arith.constant 0 : i32
    %c0_i32_0 = arith.constant 0 : i32
    %c0_i32_1 = arith.constant 0 : i32
    return %c0_i32, %c0_i32_0 : i32, i32
  }
  func.func @transform_3(%arg0: i32) -> (i32, i32) {
    %c0_i32 = arith.constant 0 : i32
    %c0_i32_0 = arith.constant 0 : i32
    %c0_i32_1 = arith.constant 0 : i32
    return %c0_i32, %c0_i32_0 : i32, i32
  }
  func.func @transform_4(%arg0: i32) -> (i32, i32) {
    %c0_i32 = arith.constant 0 : i32
    %c0_i32_0 = arith.constant 0 : i32
    %c0_i32_1 = arith.constant 0 : i32
    return %c0_i32, %c0_i32_0 : i32, i32
  }
  func.func @transform_5(%arg0: i32) -> (i32, i32) {
    %c0_i32 = arith.constant 0 : i32
    %c0_i32_0 = arith.constant 0 : i32
    %c0_i32_1 = arith.constant 0 : i32
    return %c0_i32, %c0_i32_0 : i32, i32
  }
  func.func @transform_6(%arg0: i32) -> (i32, i32) {
    %c0_i32 = arith.constant 0 : i32
    %c0_i32_0 = arith.constant 0 : i32
    %c0_i32_1 = arith.constant 0 : i32
    return %c0_i32, %c0_i32_0 : i32, i32
  }
  func.func @transform_7(%arg0: i32) -> (i32, i32) {
    %c0_i32 = arith.constant 0 : i32
    %c0_i32_0 = arith.constant 0 : i32
    return %arg0, %c0_i32 : i32, i32
  }
}

</mosaic_0001>

<llo_original>
// kernel: tpu_custom_call.1
$region0: #{tpu_custom_call.1}
  #allocation0 [shape = 'u32[]', space=smem, size = 0x4, offset = 0x4, fixed_abs, tag = 'smem constant byte address 0x4 - core index']
  #allocation1 [shape = 'u32[144,128]{1,0:T(1,128)}', space=vmem, size = 0x12000, scoped, tag = 'internal scratch']
  %s0 = inlined_call_operand.hbm [shape: f32[16,128], index: 0, kind: input, shape index: {}]
  %s1 = inlined_call_operand.vmem [shape: f32[2,128], index: 1, kind: input, shape index: {}]
  %s2 = inlined_call_operand.hbm [shape: f32[1,1024], index: 2, kind: input, shape index: {}]
  %s3 = inlined_call_operand.hbm [shape: bf16[1024,128], index: 3, kind: input, shape index: {}]
  %s4 = inlined_call_operand.vmem [shape: f32[2,128], index: 4, kind: input, shape index: {}]
  %s5 = inlined_call_operand.vmem [shape: f32[1,1024], index: 5, kind: input, shape index: {}]
  %s6 = inlined_call_operand.hbm [shape: bf16[1024,128], index: 6, kind: input, shape index: {}]
  %s7 = inlined_call_operand.hbm [shape: bf16[16,128], index: 7, kind: output, shape index: {}]
  %s8 = sld [smem:[#allocation0]]
  $region54: #{tpu_custom_call.1} parent=0
    _
  %s10 = ssub.s32 1, %s8
  %s11 = scalar_select 0, %s10, %s8
  $region1: #{tpu_custom_call.1} parent=0
    #allocation2 [shape = 'u8[8192]{0}', space=vmem, size = 0x2000, scoped, tag = 'input window, operand 0, single buffered']
    #allocation3 [shape = 's32[1]{0}', space=sflag, size = 0x4, scoped, tag = 'scoped memory for tpu_custom_call.1']
    #allocation4 [shape = 's32[1]{0}', space=sflag, size = 0x4, scoped, tag = 'scoped memory for tpu_custom_call.1']
    #allocation5 [shape = 'u8[4096]{0}', space=vmem, size = 0x1000, scoped, tag = 'input window, operand 2, single buffered']
    #allocation6 [shape = 's32[1]{0}', space=sflag, size = 0x4, scoped, tag = 'scoped memory for tpu_custom_call.1']
    #allocation7 [shape = 'u8[262144]{0}', space=vmem, size = 0x40000, scoped, tag = 'input window, operand 3, single buffered']
    #allocation8 [shape = 'u8[262144]{0}', space=vmem, size = 0x40000, scoped, tag = 'input window, operand 6, single buffered']
    #allocation9 [shape = 's32[1]{0}', space=sflag, size = 0x4, scoped, tag = 'scoped memory for tpu_custom_call.1']
    #allocation10 [shape = 'u8[4096]{0}', space=vmem, size = 0x1000, scoped, tag = 'output window, operand 0, single buffered']
    %12 = vsyncpa [#allocation3], 0
    %13 = vsyncpa [#allocation6], 0
    %14 = vsyncpa [#allocation9], 0
    %15 = vsyncpa [#allocation4], 0
    // Predicated region
    $region2: #{tpu_custom_call.1} parent=1 // pred_check
      _
    $region3: #{tpu_custom_call.1} parent=1 // pred_check_branch
      %17 = sbr.rel (0) target = $region5
    $region4: #{tpu_custom_call.1} parent=1 // pred_region
      %s19 = ssub.s32 256, 256
      %20 = vsyncadd [#allocation3], %s19
      %s21 = sshll.u32 [#allocation2], 4
      %s22 = int_to_ptr.vmem [resolvable:$true] %s21
      %27 = dma.hbm_to_vmem [thread:$0]  %s0, 256, %s22, [#allocation3], 128, 128, 8
    $region5: #{tpu_custom_call.1} parent=1 // pred_fallthru
      _
    // Predicated region
    $region6: #{tpu_custom_call.1} parent=1 // pred_check
      _
    $region7: #{tpu_custom_call.1} parent=1 // pred_check_branch
      %29 = sbr.rel (0) target = $region9
    $region8: #{tpu_custom_call.1} parent=1 // pred_region
      _
    $region9: #{tpu_custom_call.1} parent=1 // pred_fallthru
      _
    // Predicated region
    $region10: #{tpu_custom_call.1} parent=1 // pred_check
      _
    $region11: #{tpu_custom_call.1} parent=1 // pred_check_branch
      %31 = sbr.rel (0) target = $region13
    $region12: #{tpu_custom_call.1} parent=1 // pred_region
      %s33 = ssub.s32 128, 128
      %34 = vsyncadd [#allocation6], %s33
      %s36 = sshll.u32 [#allocation5], 4
      %s37 = int_to_ptr.vmem [resolvable:$true] %s36
      %39 = dma.hbm_to_vmem [thread:$0]  %s2, 128, %s37, [#allocation6]
    $region13: #{tpu_custom_call.1} parent=1 // pred_fallthru
      _
    // Predicated region
    $region14: #{tpu_custom_call.1} parent=1 // pred_check
      _
    $region15: #{tpu_custom_call.1} parent=1 // pred_check_branch
      %41 = sbr.rel (0) target = $region17
    $region16: #{tpu_custom_call.1} parent=1 // pred_region
      %s43 = ssub.s32 8192, 8192
      %44 = vsyncadd [#allocation6], %s43
      %s45 = sshll.u32 [#allocation7], 4
      %s46 = int_to_ptr.vmem [resolvable:$true] %s45
      %51 = dma.hbm_to_vmem [thread:$0]  %s3, 8192, %s46, [#allocation6], 64, 64, 4
    $region17: #{tpu_custom_call.1} parent=1 // pred_fallthru
      _
    // Predicated region
    $region18: #{tpu_custom_call.1} parent=1 // pred_check
      _
    $region19: #{tpu_custom_call.1} parent=1 // pred_check_branch
      %53 = sbr.rel (0) target = $region21
    $region20: #{tpu_custom_call.1} parent=1 // pred_region
      _
    $region21: #{tpu_custom_call.1} parent=1 // pred_fallthru
      _
    // Predicated region
    $region22: #{tpu_custom_call.1} parent=1 // pred_check
      _
    $region23: #{tpu_custom_call.1} parent=1 // pred_check_branch
      %55 = sbr.rel (0) target = $region25
    $region24: #{tpu_custom_call.1} parent=1 // pred_region
      _
    $region25: #{tpu_custom_call.1} parent=1 // pred_fallthru
      _
    // Predicated region
    $region26: #{tpu_custom_call.1} parent=1 // pred_check
      _
    $region27: #{tpu_custom_call.1} parent=1 // pred_check_branch
      %57 = sbr.rel (0) target = $region29
    $region28: #{tpu_custom_call.1} parent=1 // pred_region
      %s59 = ssub.s32 8192, 8192
      %60 = vsyncadd [#allocation9], %s59
      %s61 = sshll.u32 [#allocation8], 4
      %s62 = int_to_ptr.vmem [resolvable:$true] %s61
      %67 = dma.hbm_to_vmem [thread:$0]  %s6, 8192, %s62, [#allocation9], 64, 64, 4
    $region29: #{tpu_custom_call.1} parent=1 // pred_fallthru
      _
    // Predicated region
    $region30: #{tpu_custom_call.1} parent=1 // pred_check
      _
    $region31: #{tpu_custom_call.1} parent=1 // pred_check_branch
      %69 = sbr.rel (0) target = $region33
    $region32: #{tpu_custom_call.1} parent=1 // pred_region
      %70 = dma.done [#allocation3], 256
    $region33: #{tpu_custom_call.1} parent=1 // pred_fallthru
      _
    // Predicated region
    $region34: #{tpu_custom_call.1} parent=1 // pred_check
      _
    $region35: #{tpu_custom_call.1} parent=1 // pred_check_branch
      %72 = sbr.rel (0) target = $region37
    $region36: #{tpu_custom_call.1} parent=1 // pred_region
      %73 = dma.done [#allocation6], 128
    $region37: #{tpu_custom_call.1} parent=1 // pred_fallthru
      _
    // Predicated region
    $region38: #{tpu_custom_call.1} parent=1 // pred_check
      _
    $region39: #{tpu_custom_call.1} parent=1 // pred_check_branch
      %75 = sbr.rel (0) target = $region41
    $region40: #{tpu_custom_call.1} parent=1 // pred_region
      %76 = dma.done [#allocation6], 8192
    $region41: #{tpu_custom_call.1} parent=1 // pred_fallthru
      _
    // Predicated region
    $region42: #{tpu_custom_call.1} parent=1 // pred_check
      _
    $region43: #{tpu_custom_call.1} parent=1 // pred_check_branch
      %78 = sbr.rel (0) target = $region45
    $region44: #{tpu_custom_call.1} parent=1 // pred_region
      %79 = dma.done [#allocation9], 8192
    $region45: #{tpu_custom_call.1} parent=1 // pred_fallthru
      _
    %v82 = vld [vmem:[#allocation2] sm:$0xff]
    %v83 = vld [vmem:[#allocation2 + $0x8] sm:$0xff]
    %84 = vadd.xlane.f32.xlu0 %v82
    %v85 = vpop.xlane.xlu0 %84
    %86 = vadd.xlane.f32.xlu0 %v83
    %v87 = vpop.xlane.xlu0 %86
    %v88 = vmul.f32 %v85, 0.03125
    %v89 = vmul.f32 %v87, 0.03125
    %v90 = vmul.f32 %v82, %v82
    %v91 = vmul.f32 %v83, %v83
    %92 = vadd.xlane.f32.xlu0 %v90
    %v93 = vpop.xlane.xlu0 %92
    %94 = vadd.xlane.f32.xlu0 %v91
    %v95 = vpop.xlane.xlu0 %94
    %v96 = vmul.f32 %v93, 0.03125
    %v97 = vmul.f32 %v95, 0.03125
    %v98 = vmul.f32 %v88, %v88
    %v99 = vmul.f32 %v89, %v89
    %v100 = vsub.f32 %v96, %v98
    %v101 = vsub.f32 %v97, %v99
    %v102 = vld [vmem:[%s1] sm:$0x3]
    %v103 = vsub.f32 %v82, %v88
    %v104 = vsub.f32 %v83, %v89
    %v105 = vadd.f32 %v100, 1e-05
    %v106 = vadd.f32 %v101, 1e-05
    %v107 = vrsqrt.pop %v105
    %v108 = vrsqrt.pop %v106
    %v109 = vmul.f32 %v103, %v107
    %v110 = vmul.f32 %v104, %v108
    %v111 = vlaneseq
    %v112 = vshrl.u32 %v111, 7
    %v113 = vsub.s32 0, %v112
    %v114 = vrot.slane %v102, %v113
    %v115 = vmul.f32 %v109, %v114
    %v116 = vmul.f32 %v110, %v114
    %v117 = vlaneseq
    %v118 = vshrl.u32 %v117, 7
    %v119 = vsub.s32 1, %v118
    %v120 = vrot.slane %v102, %v119
    %v121 = vadd.f32 %v115, %v120
    %v122 = vadd.f32 %v116, %v120
    %v123 = vpack.c.bf16 %v122, %v121
    %v124 = vld [vmem:[#allocation5] sm:$0xff]
    %v126 = vlaneseq
    %v127 = vshrl.u32 %v126, 7
    %v128 = vsub.s32 0, %v127
    %v129 = vrot.slane %v124, %v128
    %v130 = vlaneseq
    %v131 = vshrl.u32 %v130, 7
    %v132 = vsub.s32 1, %v131
    %v133 = vrot.slane %v124, %v132
    %v134 = vlaneseq
    %v135 = vshrl.u32 %v134, 7
    %v136 = vsub.s32 2, %v135
    %v137 = vrot.slane %v124, %v136
    %v138 = vlaneseq
    %v139 = vshrl.u32 %v138, 7
    %v140 = vsub.s32 3, %v139
    %v141 = vrot.slane %v124, %v140
    %v142 = vlaneseq
    %v143 = vshrl.u32 %v142, 7
    %v144 = vsub.s32 4, %v143
    %v145 = vrot.slane %v124, %v144
    %v146 = vlaneseq
    %v147 = vshrl.u32 %v146, 7
    %v148 = vsub.s32 5, %v147
    %v149 = vrot.slane %v124, %v148
    %v150 = vlaneseq
    %v151 = vshrl.u32 %v150, 7
    %v152 = vsub.s32 6, %v151
    %v153 = vrot.slane %v124, %v152
    %v154 = vlaneseq
    %v155 = vshrl.u32 %v154, 7
    %v156 = vsub.s32 7, %v155
    %v157 = vrot.slane %v124, %v156
    %v166 = vpack.c.bf16 %v129, %v129
    %v167 = vpack.c.bf16 %v133, %v133
    %v168 = vpack.c.bf16 %v137, %v137
    %v169 = vpack.c.bf16 %v141, %v141
    %v170 = vpack.c.bf16 %v145, %v145
    %v171 = vpack.c.bf16 %v149, %v149
    %v172 = vpack.c.bf16 %v153, %v153
    %v173 = vpack.c.bf16 %v157, %v157
    %v175 = vpack.i.b16 %v166, %v166
    %v177 = vlaneseq
    %v178 = vshrl.u32 %v177, 7
    %v179 = vsub.s32 0, %v178
    %v180 = vrot.slane %v175, %v179
    %v182 = vpack.i.b16 %v167, %v167
    %v184 = vlaneseq
    %v185 = vshrl.u32 %v184, 7
    %v186 = vsub.s32 0, %v185
    %v187 = vrot.slane %v182, %v186
    %v189 = vpack.i.b16 %v168, %v168
    %v191 = vlaneseq
    %v192 = vshrl.u32 %v191, 7
    %v193 = vsub.s32 0, %v192
    %v194 = vrot.slane %v189, %v193
    %v196 = vpack.i.b16 %v169, %v169
    %v198 = vlaneseq
    %v199 = vshrl.u32 %v198, 7
    %v200 = vsub.s32 0, %v199
    %v201 = vrot.slane %v196, %v200
    %v203 = vpack.i.b16 %v170, %v170
    %v205 = vlaneseq
    %v206 = vshrl.u32 %v205, 7
    %v207 = vsub.s32 0, %v206
    %v208 = vrot.slane %v203, %v207
    %v210 = vpack.i.b16 %v171, %v171
    %v212 = vlaneseq
    %v213 = vshrl.u32 %v212, 7
    %v214 = vsub.s32 0, %v213
    %v215 = vrot.slane %v210, %v214
    %v217 = vpack.i.b16 %v172, %v172
    %v219 = vlaneseq
    %v220 = vshrl.u32 %v219, 7
    %v221 = vsub.s32 0, %v220
    %v222 = vrot.slane %v217, %v221
    %v224 = vpack.i.b16 %v173, %v173
    %v226 = vlaneseq
    %v227 = vshrl.u32 %v226, 7
    %v228 = vsub.s32 0, %v227
    %v229 = vrot.slane %v224, %v228
    %v230 = vsub.bf16 %v123, %v180
    %v231 = vsub.bf16 %v123, %v187
    %v232 = vsub.bf16 %v123, %v194
    %v233 = vsub.bf16 %v123, %v201
    %v234 = vsub.bf16 %v123, %v208
    %v235 = vsub.bf16 %v123, %v215
    %v236 = vsub.bf16 %v123, %v222
    %v237 = vsub.bf16 %v123, %v229
    %v238 = vtanh.bf16.pop %v230
    %v239 = vtanh.bf16.pop %v231
    %v240 = vtanh.bf16.pop %v232
    %v241 = vtanh.bf16.pop %v233
    %v242 = vtanh.bf16.pop %v234
    %v243 = vtanh.bf16.pop %v235
    %v244 = vtanh.bf16.pop %v236
    %v245 = vtanh.bf16.pop %v237
    %v246 = vmul.bf16 %v238, %v238
    %v247 = vmul.bf16 %v239, %v239
    %v248 = vmul.bf16 %v240, %v240
    %v249 = vmul.bf16 %v241, %v241
    %v250 = vmul.bf16 %v242, %v242
    %v251 = vmul.bf16 %v243, %v243
    %v252 = vmul.bf16 %v244, %v244
    %v253 = vmul.bf16 %v245, %v245
    %v254 = vsub.bf16 1065369472, %v246
    %v255 = vsub.bf16 1065369472, %v247
    %v256 = vsub.bf16 1065369472, %v248
    %v257 = vsub.bf16 1065369472, %v249
    %v258 = vsub.bf16 1065369472, %v250
    %v259 = vsub.bf16 1065369472, %v251
    %v260 = vsub.bf16 1065369472, %v252
    %v261 = vsub.bf16 1065369472, %v253
    %v262 = vld [vmem:[#allocation7] sm:$0xf]
    %v263 = vld [vmem:[#allocation7 + $0x4] sm:$0xf]
    %v264 = vld [vmem:[#allocation7 + $0x8] sm:$0xf]
    %v265 = vld [vmem:[#allocation7 + $0xc] sm:$0xf]
    %v266 = vld [vmem:[#allocation7 + $0x10] sm:$0xf]
    %v267 = vld [vmem:[#allocation7 + $0x14] sm:$0xf]
    %v268 = vld [vmem:[#allocation7 + $0x18] sm:$0xf]
    %v269 = vld [vmem:[#allocation7 + $0x1c] sm:$0xf]
    %v270 = vld [vmem:[#allocation7 + $0x20] sm:$0xf]
    %v271 = vld [vmem:[#allocation7 + $0x24] sm:$0xf]
    %v272 = vld [vmem:[#allocation7 + $0x28] sm:$0xf]
    %v273 = vld [vmem:[#allocation7 + $0x2c] sm:$0xf]
    %v274 = vld [vmem:[#allocation7 + $0x30] sm:$0xf]
    %v275 = vld [vmem:[#allocation7 + $0x34] sm:$0xf]
    %v276 = vld [vmem:[#allocation7 + $0x38] sm:$0xf]
    %v277 = vld [vmem:[#allocation7 + $0x3c] sm:$0xf]
    %v278 = vld [vmem:[#allocation7 + $0x40] sm:$0xf]
    %v279 = vld [vmem:[#allocation7 + $0x44] sm:$0xf]
    %v280 = vld [vmem:[#allocation7 + $0x48] sm:$0xf]
    %v281 = vld [vmem:[#allocation7 + $0x4c] sm:$0xf]
    %v282 = vld [vmem:[#allocation7 + $0x50] sm:$0xf]
    %v283 = vld [vmem:[#allocation7 + $0x54] sm:$0xf]
    %v284 = vld [vmem:[#allocation7 + $0x58] sm:$0xf]
    %v285 = vld [vmem:[#allocation7 + $0x5c] sm:$0xf]
    %v286 = vld [vmem:[#allocation7 + $0x60] sm:$0xf]
    %v287 = vld [vmem:[#allocation7 + $0x64] sm:$0xf]
    %v288 = vld [vmem:[#allocation7 + $0x68] sm:$0xf]
    %v289 = vld [vmem:[#allocation7 + $0x6c] sm:$0xf]
    %v290 = vld [vmem:[#allocation7 + $0x70] sm:$0xf]
    %v291 = vld [vmem:[#allocation7 + $0x74] sm:$0xf]
    %v292 = vld [vmem:[#allocation7 + $0x78] sm:$0xf]
    %v293 = vld [vmem:[#allocation7 + $0x7c] sm:$0xf]
    %v294 = vld [vmem:[#allocation7 + $0x80] sm:$0xf]
    %v295 = vld [vmem:[#allocation7 + $0x84] sm:$0xf]
    %v296 = vld [vmem:[#allocation7 + $0x88] sm:$0xf]
    %v297 = vld [vmem:[#allocation7 + $0x8c] sm:$0xf]
    %v298 = vld [vmem:[#allocation7 + $0x90] sm:$0xf]
    %v299 = vld [vmem:[#allocation7 + $0x94] sm:$0xf]
    %v300 = vld [vmem:[#allocation7 + $0x98] sm:$0xf]
    %v301 = vld [vmem:[#allocation7 + $0x9c] sm:$0xf]
    %v302 = vld [vmem:[#allocation7 + $0xa0] sm:$0xf]
    %v303 = vld [vmem:[#allocation7 + $0xa4] sm:$0xf]
    %v304 = vld [vmem:[#allocation7 + $0xa8] sm:$0xf]
    %v305 = vld [vmem:[#allocation7 + $0xac] sm:$0xf]
    %v306 = vld [vmem:[#allocation7 + $0xb0] sm:$0xf]
    %v307 = vld [vmem:[#allocation7 + $0xb4] sm:$0xf]
    %v308 = vld [vmem:[#allocation7 + $0xb8] sm:$0xf]
    %v309 = vld [vmem:[#allocation7 + $0xbc] sm:$0xf]
    %v310 = vld [vmem:[#allocation7 + $0xc0] sm:$0xf]
    %v311 = vld [vmem:[#allocation7 + $0xc4] sm:$0xf]
    %v312 = vld [vmem:[#allocation7 + $0xc8] sm:$0xf]
    %v313 = vld [vmem:[#allocation7 + $0xcc] sm:$0xf]
    %v314 = vld [vmem:[#allocation7 + $0xd0] sm:$0xf]
    %v315 = vld [vmem:[#allocation7 + $0xd4] sm:$0xf]
    %v316 = vld [vmem:[#allocation7 + $0xd8] sm:$0xf]
    %v317 = vld [vmem:[#allocation7 + $0xdc] sm:$0xf]
    %v318 = vld [vmem:[#allocation7 + $0xe0] sm:$0xf]
    %v319 = vld [vmem:[#allocation7 + $0xe4] sm:$0xf]
    %v320 = vld [vmem:[#allocation7 + $0xe8] sm:$0xf]
    %v321 = vld [vmem:[#allocation7 + $0xec] sm:$0xf]
    %v322 = vld [vmem:[#allocation7 + $0xf0] sm:$0xf]
    %v323 = vld [vmem:[#allocation7 + $0xf4] sm:$0xf]
    %v324 = vld [vmem:[#allocation7 + $0xf8] sm:$0xf]
    %v325 = vld [vmem:[#allocation7 + $0xfc] sm:$0xf]
    %v326 = vld [vmem:[#allocation7 + $0x100] sm:$0xf]
    %v327 = vld [vmem:[#allocation7 + $0x104] sm:$0xf]
    %v328 = vld [vmem:[#allocation7 + $0x108] sm:$0xf]
    %v329 = vld [vmem:[#allocation7 + $0x10c] sm:$0xf]
    %v330 = vld [vmem:[#allocation7 + $0x110] sm:$0xf]
    %v331 = vld [vmem:[#allocation7 + $0x114] sm:$0xf]
    %v332 = vld [vmem:[#allocation7 + $0x118] sm:$0xf]
    %v333 = vld [vmem:[#allocation7 + $0x11c] sm:$0xf]
    %v334 = vld [vmem:[#allocation7 + $0x120] sm:$0xf]
    %v335 = vld [vmem:[#allocation7 + $0x124] sm:$0xf]
    %v336 = vld [vmem:[#allocation7 + $0x128] sm:$0xf]
    %v337 = vld [vmem:[#allocation7 + $0x12c] sm:$0xf]
    %v338 = vld [vmem:[#allocation7 + $0x130] sm:$0xf]
    %v339 = vld [vmem:[#allocation7 + $0x134] sm:$0xf]
    %v340 = vld [vmem:[#allocation7 + $0x138] sm:$0xf]
    %v341 = vld [vmem:[#allocation7 + $0x13c] sm:$0xf]
    %v342 = vld [vmem:[#allocation7 + $0x140] sm:$0xf]
    %v343 = vld [vmem:[#allocation7 + $0x144] sm:$0xf]
    %v344 = vld [vmem:[#allocation7 + $0x148] sm:$0xf]
    %v345 = vld [vmem:[#allocation7 + $0x14c] sm:$0xf]
    %v346 = vld [vmem:[#allocation7 + $0x150] sm:$0xf]
    %v347 = vld [vmem:[#allocation7 + $0x154] sm:$0xf]
    %v348 = vld [vmem:[#allocation7 + $0x158] sm:$0xf]
    %v349 = vld [vmem:[#allocation7 + $0x15c] sm:$0xf]
    %v350 = vld [vmem:[#allocation7 + $0x160] sm:$0xf]
    %v351 = vld [vmem:[#allocation7 + $0x164] sm:$0xf]
    %v352 = vld [vmem:[#allocation7 + $0x168] sm:$0xf]
    %v353 = vld [vmem:[#allocation7 + $0x16c] sm:$0xf]
    %v354 = vld [vmem:[#allocation7 + $0x170] sm:$0xf]
    %v355 = vld [vmem:[#allocation7 + $0x174] sm:$0xf]
    %v356 = vld [vmem:[#allocation7 + $0x178] sm:$0xf]
    %v357 = vld [vmem:[#allocation7 + $0x17c] sm:$0xf]
    %v358 = vld [vmem:[#allocation7 + $0x180] sm:$0xf]
    %v359 = vld [vmem:[#allocation7 + $0x184] sm:$0xf]
    %v360 = vld [vmem:[#allocation7 + $0x188] sm:$0xf]
    %v361 = vld [vmem:[#allocation7 + $0x18c] sm:$0xf]
    %v362 = vld [vmem:[#allocation7 + $0x190] sm:$0xf]
    %v363 = vld [vmem:[#allocation7 + $0x194] sm:$0xf]
    %v364 = vld [vmem:[#allocation7 + $0x198] sm:$0xf]
    %v365 = vld [vmem:[#allocation7 + $0x19c] sm:$0xf]
    %v366 = vld [vmem:[#allocation7 + $0x1a0] sm:$0xf]
    %v367 = vld [vmem:[#allocation7 + $0x1a4] sm:$0xf]
    %v368 = vld [vmem:[#allocation7 + $0x1a8] sm:$0xf]
    %v369 = vld [vmem:[#allocation7 + $0x1ac] sm:$0xf]
    %v370 = vld [vmem:[#allocation7 + $0x1b0] sm:$0xf]
    %v371 = vld [vmem:[#allocation7 + $0x1b4] sm:$0xf]
    %v372 = vld [vmem:[#allocation7 + $0x1b8] sm:$0xf]
    %v373 = vld [vmem:[#allocation7 + $0x1bc] sm:$0xf]
    %v374 = vld [vmem:[#allocation7 + $0x1c0] sm:$0xf]
    %v375 = vld [vmem:[#allocation7 + $0x1c4] sm:$0xf]
    %v376 = vld [vmem:[#allocation7 + $0x1c8] sm:$0xf]
    %v377 = vld [vmem:[#allocation7 + $0x1cc] sm:$0xf]
    %v378 = vld [vmem:[#allocation7 + $0x1d0] sm:$0xf]
    %v379 = vld [vmem:[#allocation7 + $0x1d4] sm:$0xf]
    %v380 = vld [vmem:[#allocation7 + $0x1d8] sm:$0xf]
    %v381 = vld [vmem:[#allocation7 + $0x1dc] sm:$0xf]
    %v382 = vld [vmem:[#allocation7 + $0x1e0] sm:$0xf]
    %v383 = vld [vmem:[#allocation7 + $0x1e4] sm:$0xf]
    %v384 = vld [vmem:[#allocation7 + $0x1e8] sm:$0xf]
    %v385 = vld [vmem:[#allocation7 + $0x1ec] sm:$0xf]
    %v386 = vld [vmem:[#allocation7 + $0x1f0] sm:$0xf]
    %v387 = vld [vmem:[#allocation7 + $0x1f4] sm:$0xf]
    %v388 = vld [vmem:[#allocation7 + $0x1f8] sm:$0xf]
    %v389 = vld [vmem:[#allocation7 + $0x1fc] sm:$0xf]
    %v518 = vunpack.c.l.b16 %v262
    %v519 = vunpack.c.l.b16 %v263
    %v520 = vunpack.c.l.b16 %v264
    %v521 = vunpack.c.l.b16 %v265
    %v522 = vunpack.c.l.b16 %v266
    %v523 = vunpack.c.l.b16 %v267
    %v524 = vunpack.c.l.b16 %v268
    %v525 = vunpack.c.l.b16 %v269
    %v526 = vunpack.c.l.b16 %v270
    %v527 = vunpack.c.l.b16 %v271
    %v528 = vunpack.c.l.b16 %v272
    %v529 = vunpack.c.l.b16 %v273
    %v530 = vunpack.c.l.b16 %v274
    %v531 = vunpack.c.l.b16 %v275
    %v532 = vunpack.c.l.b16 %v276
    %v533 = vunpack.c.l.b16 %v277
    %v534 = vunpack.c.l.b16 %v278
    %v535 = vunpack.c.l.b16 %v279
    %v536 = vunpack.c.l.b16 %v280
    %v537 = vunpack.c.l.b16 %v281
    %v538 = vunpack.c.l.b16 %v282
    %v539 = vunpack.c.l.b16 %v283
    %v540 = vunpack.c.l.b16 %v284
    %v541 = vunpack.c.l.b16 %v285
    %v542 = vunpack.c.l.b16 %v286
    %v543 = vunpack.c.l.b16 %v287
    %v544 = vunpack.c.l.b16 %v288
    %v545 = vunpack.c.l.b16 %v289
    %v546 = vunpack.c.l.b16 %v290
    %v547 = vunpack.c.l.b16 %v291
    %v548 = vunpack.c.l.b16 %v292
    %v549 = vunpack.c.l.b16 %v293
    %v550 = vunpack.c.l.b16 %v294
    %v551 = vunpack.c.l.b16 %v295
    %v552 = vunpack.c.l.b16 %v296
    %v553 = vunpack.c.l.b16 %v297
    %v554 = vunpack.c.l.b16 %v298
    %v555 = vunpack.c.l.b16 %v299
    %v556 = vunpack.c.l.b16 %v300
    %v557 = vunpack.c.l.b16 %v301
    %v558 = vunpack.c.l.b16 %v302
    %v559 = vunpack.c.l.b16 %v303
    %v560 = vunpack.c.l.b16 %v304
    %v561 = vunpack.c.l.b16 %v305
    %v562 = vunpack.c.l.b16 %v306
    %v563 = vunpack.c.l.b16 %v307
    %v564 = vunpack.c.l.b16 %v308
    %v565 = vunpack.c.l.b16 %v309
    %v566 = vunpack.c.l.b16 %v310
    %v567 = vunpack.c.l.b16 %v311
    %v568 = vunpack.c.l.b16 %v312
    %v569 = vunpack.c.l.b16 %v313
    %v570 = vunpack.c.l.b16 %v314
    %v571 = vunpack.c.l.b16 %v315
    %v572 = vunpack.c.l.b16 %v316
    %v573 = vunpack.c.l.b16 %v317
    %v574 = vunpack.c.l.b16 %v318
    %v575 = vunpack.c.l.b16 %v319
    %v576 = vunpack.c.l.b16 %v320
    %v577 = vunpack.c.l.b16 %v321
    %v578 = vunpack.c.l.b16 %v322
    %v579 = vunpack.c.l.b16 %v323
    %v580 = vunpack.c.l.b16 %v324
    %v581 = vunpack.c.l.b16 %v325
    %v582 = vunpack.c.l.b16 %v326
    %v583 = vunpack.c.l.b16 %v327
    %v584 = vunpack.c.l.b16 %v328
    %v585 = vunpack.c.l.b16 %v329
    %v586 = vunpack.c.l.b16 %v330
    %v587 = vunpack.c.l.b16 %v331
    %v588 = vunpack.c.l.b16 %v332
    %v589 = vunpack.c.l.b16 %v333
    %v590 = vunpack.c.l.b16 %v334
    %v591 = vunpack.c.l.b16 %v335
    %v592 = vunpack.c.l.b16 %v336
    %v593 = vunpack.c.l.b16 %v337
    %v594 = vunpack.c.l.b16 %v338
    %v595 = vunpack.c.l.b16 %v339
    %v596 = vunpack.c.l.b16 %v340
    %v597 = vunpack.c.l.b16 %v341
    %v598 = vunpack.c.l.b16 %v342
    %v599 = vunpack.c.l.b16 %v343
    %v600 = vunpack.c.l.b16 %v344
    %v601 = vunpack.c.l.b16 %v345
    %v602 = vunpack.c.l.b16 %v346
    %v603 = vunpack.c.l.b16 %v347
    %v604 = vunpack.c.l.b16 %v348
    %v605 = vunpack.c.l.b16 %v349
    %v606 = vunpack.c.l.b16 %v350
    %v607 = vunpack.c.l.b16 %v351
    %v608 = vunpack.c.l.b16 %v352
    %v609 = vunpack.c.l.b16 %v353
    %v610 = vunpack.c.l.b16 %v354
    %v611 = vunpack.c.l.b16 %v355
    %v612 = vunpack.c.l.b16 %v356
    %v613 = vunpack.c.l.b16 %v357
    %v614 = vunpack.c.l.b16 %v358
    %v615 = vunpack.c.l.b16 %v359
    %v616 = vunpack.c.l.b16 %v360
    %v617 = vunpack.c.l.b16 %v361
    %v618 = vunpack.c.l.b16 %v362
    %v619 = vunpack.c.l.b16 %v363
    %v620 = vunpack.c.l.b16 %v364
    %v621 = vunpack.c.l.b16 %v365
    %v622 = vunpack.c.l.b16 %v366
    %v623 = vunpack.c.l.b16 %v367
    %v624 = vunpack.c.l.b16 %v368
    %v625 = vunpack.c.l.b16 %v369
    %v626 = vunpack.c.l.b16 %v370
    %v627 = vunpack.c.l.b16 %v371
    %v628 = vunpack.c.l.b16 %v372
    %v629 = vunpack.c.l.b16 %v373
    %v630 = vunpack.c.l.b16 %v374
    %v631 = vunpack.c.l.b16 %v375
    %v632 = vunpack.c.l.b16 %v376
    %v633 = vunpack.c.l.b16 %v377
    %v634 = vunpack.c.l.b16 %v378
    %v635 = vunpack.c.l.b16 %v379
    %v636 = vunpack.c.l.b16 %v380
    %v637 = vunpack.c.l.b16 %v381
    %v638 = vunpack.c.l.b16 %v382
    %v639 = vunpack.c.l.b16 %v383
    %v640 = vunpack.c.l.b16 %v384
    %v641 = vunpack.c.l.b16 %v385
    %v642 = vunpack.c.l.b16 %v386
    %v643 = vunpack.c.l.b16 %v387
    %v644 = vunpack.c.l.b16 %v388
    %v645 = vunpack.c.l.b16 %v389
    %v646 = vpack.c.b16 %v519, %v518
    %v647 = vpack.c.b16 %v521, %v520
    %v648 = vpack.c.b16 %v523, %v522
    %v649 = vpack.c.b16 %v525, %v524
    %v650 = vpack.c.b16 %v527, %v526
    %v651 = vpack.c.b16 %v529, %v528
    %v652 = vpack.c.b16 %v531, %v530
    %v653 = vpack.c.b16 %v533, %v532
    %v654 = vpack.c.b16 %v535, %v534
    %v655 = vpack.c.b16 %v537, %v536
    %v656 = vpack.c.b16 %v539, %v538
    %v657 = vpack.c.b16 %v541, %v540
    %v658 = vpack.c.b16 %v543, %v542
    %v659 = vpack.c.b16 %v545, %v544
    %v660 = vpack.c.b16 %v547, %v546
    %v661 = vpack.c.b16 %v549, %v548
    %v662 = vpack.c.b16 %v551, %v550
    %v663 = vpack.c.b16 %v553, %v552
    %v664 = vpack.c.b16 %v555, %v554
    %v665 = vpack.c.b16 %v557, %v556
    %v666 = vpack.c.b16 %v559, %v558
    %v667 = vpack.c.b16 %v561, %v560
    %v668 = vpack.c.b16 %v563, %v562
    %v669 = vpack.c.b16 %v565, %v564
    %v670 = vpack.c.b16 %v567, %v566
    %v671 = vpack.c.b16 %v569, %v568
    %v672 = vpack.c.b16 %v571, %v570
    %v673 = vpack.c.b16 %v573, %v572
    %v674 = vpack.c.b16 %v575, %v574
    %v675 = vpack.c.b16 %v577, %v576
    %v676 = vpack.c.b16 %v579, %v578
    %v677 = vpack.c.b16 %v581, %v580
    %v678 = vpack.c.b16 %v583, %v582
    %v679 = vpack.c.b16 %v585, %v584
    %v680 = vpack.c.b16 %v587, %v586
    %v681 = vpack.c.b16 %v589, %v588
    %v682 = vpack.c.b16 %v591, %v590
    %v683 = vpack.c.b16 %v593, %v592
    %v684 = vpack.c.b16 %v595, %v594
    %v685 = vpack.c.b16 %v597, %v596
    %v686 = vpack.c.b16 %v599, %v598
    %v687 = vpack.c.b16 %v601, %v600
    %v688 = vpack.c.b16 %v603, %v602
    %v689 = vpack.c.b16 %v605, %v604
    %v690 = vpack.c.b16 %v607, %v606
    %v691 = vpack.c.b16 %v609, %v608
    %v692 = vpack.c.b16 %v611, %v610
    %v693 = vpack.c.b16 %v613, %v612
    %v694 = vpack.c.b16 %v615, %v614
    %v695 = vpack.c.b16 %v617, %v616
    %v696 = vpack.c.b16 %v619, %v618
    %v697 = vpack.c.b16 %v621, %v620
    %v698 = vpack.c.b16 %v623, %v622
    %v699 = vpack.c.b16 %v625, %v624
    %v700 = vpack.c.b16 %v627, %v626
    %v701 = vpack.c.b16 %v629, %v628
    %v702 = vpack.c.b16 %v631, %v630
    %v703 = vpack.c.b16 %v633, %v632
    %v704 = vpack.c.b16 %v635, %v634
    %v705 = vpack.c.b16 %v637, %v636
    %v706 = vpack.c.b16 %v639, %v638
    %v707 = vpack.c.b16 %v641, %v640
    %v708 = vpack.c.b16 %v643, %v642
    %v709 = vpack.c.b16 %v645, %v644
    %774 = vmatprep.subr.bf16.mxu0 0
    %775 = vmatpush1.bf16.msra.mxu0 %v646
    %776 = vmatprep.subr.bf16.mxu0 0
    %777 = vmatpush1.bf16.msra.mxu0 %v647
    %778 = vmatprep.subr.bf16.mxu0 0
    %779 = vmatpush1.bf16.msra.mxu0 %v648
    %780 = vmatprep.subr.bf16.mxu0 0
    %781 = vmatpush1.bf16.msra.mxu0 %v649
    %782 = vmatprep.subr.bf16.mxu0 0
    %783 = vmatpush1.bf16.msra.mxu0 %v650
    %784 = vmatprep.subr.bf16.mxu0 0
    %785 = vmatpush1.bf16.msra.mxu0 %v651
    %786 = vmatprep.subr.bf16.mxu0 0
    %787 = vmatpush1.bf16.msra.mxu0 %v652
    %788 = vmatprep.subr.bf16.mxu0 0
    %789 = vmatpush1.bf16.msra.mxu0 %v653
    %790 = vmatprep.subr.bf16.mxu0 0
    %791 = vmatpush1.bf16.msra.mxu0 %v654
    %792 = vmatprep.subr.bf16.mxu0 0
    %793 = vmatpush1.bf16.msra.mxu0 %v655
    %794 = vmatprep.subr.bf16.mxu0 0
    %795 = vmatpush1.bf16.msra.mxu0 %v656
    %796 = vmatprep.subr.bf16.mxu0 0
    %797 = vmatpush1.bf16.msra.mxu0 %v657
    %798 = vmatprep.subr.bf16.mxu0 0
    %799 = vmatpush1.bf16.msra.mxu0 %v658
    %800 = vmatprep.subr.bf16.mxu0 0
    %801 = vmatpush1.bf16.msra.mxu0 %v659
    %802 = vmatprep.subr.bf16.mxu0 0
    %803 = vmatpush1.bf16.msra.mxu0 %v660
    %804 = vmatprep.subr.bf16.mxu0 0
    %805 = vmatpush1.bf16.msra.mxu0 %v661
    %806 = vmatprep.mubr.bf16.mxu0 %v255
    %807 = vmatmul.mubr.bf16.gmra.mrb[0].mxu0 %v254
    %v808 = vpop.f32.mrb[0].mxu0
    %v809 = vadd.f32 0.0, %v808
    %v810 = vpop.f32.mrb[0].mxu0
    %v811 = vpop.f32.mrb[0].mxu0
    %v812 = vadd.f32 0.0, %v811
    %v813 = vpop.f32.mrb[0].mxu0
    %814 = vdwg.mxu0
    %815 = vmatprep.subr.bf16.mxu0 0
    %816 = vmatpush1.bf16.msra.mxu0 %v662
    %817 = vmatprep.subr.bf16.mxu0 0
    %818 = vmatpush1.bf16.msra.mxu0 %v663
    %819 = vmatprep.subr.bf16.mxu0 0
    %820 = vmatpush1.bf16.msra.mxu0 %v664
    %821 = vmatprep.subr.bf16.mxu0 0
    %822 = vmatpush1.bf16.msra.mxu0 %v665
    %823 = vmatprep.subr.bf16.mxu0 0
    %824 = vmatpush1.bf16.msra.mxu0 %v666
    %825 = vmatprep.subr.bf16.mxu0 0
    %826 = vmatpush1.bf16.msra.mxu0 %v667
    %827 = vmatprep.subr.bf16.mxu0 0
    %828 = vmatpush1.bf16.msra.mxu0 %v668
    %829 = vmatprep.subr.bf16.mxu0 0
    %830 = vmatpush1.bf16.msra.mxu0 %v669
    %831 = vmatprep.subr.bf16.mxu0 0
    %832 = vmatpush1.bf16.msra.mxu0 %v670
    %833 = vmatprep.subr.bf16.mxu0 0
    %834 = vmatpush1.bf16.msra.mxu0 %v671
    %835 = vmatprep.subr.bf16.mxu0 0
    %836 = vmatpush1.bf16.msra.mxu0 %v672
    %837 = vmatprep.subr.bf16.mxu0 0
    %838 = vmatpush1.bf16.msra.mxu0 %v673
    %839 = vmatprep.subr.bf16.mxu0 0
    %840 = vmatpush1.bf16.msra.mxu0 %v674
    %841 = vmatprep.subr.bf16.mxu0 0
    %842 = vmatpush1.bf16.msra.mxu0 %v675
    %843 = vmatprep.subr.bf16.mxu0 0
    %844 = vmatpush1.bf16.msra.mxu0 %v676
    %845 = vmatprep.subr.bf16.mxu0 0
    %846 = vmatpush1.bf16.msra.mxu0 %v677
    %847 = vmatprep.mubr.bf16.mxu0 %v257
    %848 = vmatmul.mubr.bf16.gmra.mrb[0].mxu0 %v256
    %v849 = vpop.f32.mrb[0].mxu0
    %v850 = vadd.f32 %v809, %v849
    %v851 = vpop.f32.mrb[0].mxu0
    %v852 = vpop.f32.mrb[0].mxu0
    %v853 = vadd.f32 %v812, %v852
    %v854 = vpop.f32.mrb[0].mxu0
    %855 = vdwg.mxu0
    %856 = vmatprep.subr.bf16.mxu0 0
    %857 = vmatpush1.bf16.msra.mxu0 %v678
    %858 = vmatprep.subr.bf16.mxu0 0
    %859 = vmatpush1.bf16.msra.mxu0 %v679
    %860 = vmatprep.subr.bf16.mxu0 0
    %861 = vmatpush1.bf16.msra.mxu0 %v680
    %862 = vmatprep.subr.bf16.mxu0 0
    %863 = vmatpush1.bf16.msra.mxu0 %v681
    %864 = vmatprep.subr.bf16.mxu0 0
    %865 = vmatpush1.bf16.msra.mxu0 %v682
    %866 = vmatprep.subr.bf16.mxu0 0
    %867 = vmatpush1.bf16.msra.mxu0 %v683
    %868 = vmatprep.subr.bf16.mxu0 0
    %869 = vmatpush1.bf16.msra.mxu0 %v684
    %870 = vmatprep.subr.bf16.mxu0 0
    %871 = vmatpush1.bf16.msra.mxu0 %v685
    %872 = vmatprep.subr.bf16.mxu0 0
    %873 = vmatpush1.bf16.msra.mxu0 %v686
    %874 = vmatprep.subr.bf16.mxu0 0
    %875 = vmatpush1.bf16.msra.mxu0 %v687
    %876 = vmatprep.subr.bf16.mxu0 0
    %877 = vmatpush1.bf16.msra.mxu0 %v688
    %878 = vmatprep.subr.bf16.mxu0 0
    %879 = vmatpush1.bf16.msra.mxu0 %v689
    %880 = vmatprep.subr.bf16.mxu0 0
    %881 = vmatpush1.bf16.msra.mxu0 %v690
    %882 = vmatprep.subr.bf16.mxu0 0
    %883 = vmatpush1.bf16.msra.mxu0 %v691
    %884 = vmatprep.subr.bf16.mxu0 0
    %885 = vmatpush1.bf16.msra.mxu0 %v692
    %886 = vmatprep.subr.bf16.mxu0 0
    %887 = vmatpush1.bf16.msra.mxu0 %v693
    %888 = vmatprep.mubr.bf16.mxu0 %v259
    %889 = vmatmul.mubr.bf16.gmra.mrb[0].mxu0 %v258
    %v890 = vpop.f32.mrb[0].mxu0
    %v891 = vadd.f32 %v850, %v890
    %v892 = vpop.f32.mrb[0].mxu0
    %v893 = vpop.f32.mrb[0].mxu0
    %v894 = vadd.f32 %v853, %v893
    %v895 = vpop.f32.mrb[0].mxu0
    %896 = vdwg.mxu0
    %897 = vmatprep.subr.bf16.mxu0 0
    %898 = vmatpush1.bf16.msra.mxu0 %v694
    %899 = vmatprep.subr.bf16.mxu0 0
    %900 = vmatpush1.bf16.msra.mxu0 %v695
    %901 = vmatprep.subr.bf16.mxu0 0
    %902 = vmatpush1.bf16.msra.mxu0 %v696
    %903 = vmatprep.subr.bf16.mxu0 0
    %904 = vmatpush1.bf16.msra.mxu0 %v697
    %905 = vmatprep.subr.bf16.mxu0 0
    %906 = vmatpush1.bf16.msra.mxu0 %v698
    %907 = vmatprep.subr.bf16.mxu0 0
    %908 = vmatpush1.bf16.msra.mxu0 %v699
    %909 = vmatprep.subr.bf16.mxu0 0
    %910 = vmatpush1.bf16.msra.mxu0 %v700
    %911 = vmatprep.subr.bf16.mxu0 0
    %912 = vmatpush1.bf16.msra.mxu0 %v701
    %913 = vmatprep.subr.bf16.mxu0 0
    %914 = vmatpush1.bf16.msra.mxu0 %v702
    %915 = vmatprep.subr.bf16.mxu0 0
    %916 = vmatpush1.bf16.msra.mxu0 %v703
    %917 = vmatprep.subr.bf16.mxu0 0
    %918 = vmatpush1.bf16.msra.mxu0 %v704
    %919 = vmatprep.subr.bf16.mxu0 0
    %920 = vmatpush1.bf16.msra.mxu0 %v705
    %921 = vmatprep.subr.bf16.mxu0 0
    %922 = vmatpush1.bf16.msra.mxu0 %v706
    %923 = vmatprep.subr.bf16.mxu0 0
    %924 = vmatpush1.bf16.msra.mxu0 %v707
    %925 = vmatprep.subr.bf16.mxu0 0
    %926 = vmatpush1.bf16.msra.mxu0 %v708
    %927 = vmatprep.subr.bf16.mxu0 0
    %928 = vmatpush1.bf16.msra.mxu0 %v709
    %929 = vmatprep.mubr.bf16.mxu0 %v261
    %930 = vmatmul.mubr.bf16.gmra.mrb[0].mxu0 %v260
    %v931 = vpop.f32.mrb[0].mxu0
    %v932 = vadd.f32 %v891, %v931
    %v933 = vpop.f32.mrb[0].mxu0
    %v934 = vpop.f32.mrb[0].mxu0
    %v935 = vadd.f32 %v894, %v934
    %v936 = vpop.f32.mrb[0].mxu0
    %937 = vdwg.mxu0
    %938 = vadd.xlane.f32.xlu0 %v932
    %v939 = vpop.xlane.xlu0 %938
    %940 = vadd.xlane.f32.xlu0 %v935
    %v941 = vpop.xlane.xlu0 %940
    %v942 = vmul.f32 %v939, 0.015625
    %v943 = vmul.f32 %v941, 0.015625
    %v944 = vmul.f32 %v932, %v932
    %v945 = vmul.f32 %v935, %v935
    %946 = vadd.xlane.f32.xlu0 %v944
    %v947 = vpop.xlane.xlu0 %946
    %948 = vadd.xlane.f32.xlu0 %v945
    %v949 = vpop.xlane.xlu0 %948
    %v950 = vmul.f32 %v947, 0.015625
    %v951 = vmul.f32 %v949, 0.015625
    %v952 = vmul.f32 %v942, %v942
    %v953 = vmul.f32 %v943, %v943
    %v954 = vsub.f32 %v950, %v952
    %v955 = vsub.f32 %v951, %v953
    %v956 = vld [vmem:[%s4] sm:$0x3]
    %v957 = vsub.f32 %v932, %v942
    %v958 = vsub.f32 %v935, %v943
    %v959 = vadd.f32 %v954, 1e-05
    %v960 = vadd.f32 %v955, 1e-05
    %v961 = vrsqrt.pop %v959
    %v962 = vrsqrt.pop %v960
    %v963 = vmul.f32 %v957, %v961
    %v964 = vmul.f32 %v958, %v962
    %v965 = vlaneseq
    %v966 = vshrl.u32 %v965, 7
    %v967 = vsub.s32 0, %v966
    %v968 = vrot.slane %v956, %v967
    %v969 = vmul.f32 %v963, %v968
    %v970 = vmul.f32 %v964, %v968
    %v971 = vlaneseq
    %v972 = vshrl.u32 %v971, 7
    %v973 = vsub.s32 1, %v972
    %v974 = vrot.slane %v956, %v973
    %v975 = vadd.f32 %v969, %v974
    %v976 = vadd.f32 %v970, %v974
    %v977 = vpack.c.bf16 %v976, %v975
    %v978 = vld [vmem:[%s5] sm:$0xff]
    %v980 = vlaneseq
    %v981 = vshrl.u32 %v980, 7
    %v982 = vsub.s32 0, %v981
    %v983 = vrot.slane %v978, %v982
    %v984 = vlaneseq
    %v985 = vshrl.u32 %v984, 7
    %v986 = vsub.s32 1, %v985
    %v987 = vrot.slane %v978, %v986
    %v988 = vlaneseq
    %v989 = vshrl.u32 %v988, 7
    %v990 = vsub.s32 2, %v989
    %v991 = vrot.slane %v978, %v990
    %v992 = vlaneseq
    %v993 = vshrl.u32 %v992, 7
    %v994 = vsub.s32 3, %v993
    %v995 = vrot.slane %v978, %v994
    %v996 = vlaneseq
    %v997 = vshrl.u32 %v996, 7
    %v998 = vsub.s32 4, %v997
    %v999 = vrot.slane %v978, %v998
    %v1000 = vlaneseq
    %v1001 = vshrl.u32 %v1000, 7
    %v1002 = vsub.s32 5, %v1001
    %v1003 = vrot.slane %v978, %v1002
    %v1004 = vlaneseq
    %v1005 = vshrl.u32 %v1004, 7
    %v1006 = vsub.s32 6, %v1005
    %v1007 = vrot.slane %v978, %v1006
    %v1008 = vlaneseq
    %v1009 = vshrl.u32 %v1008, 7
    %v1010 = vsub.s32 7, %v1009
    %v1011 = vrot.slane %v978, %v1010
    %v1020 = vpack.c.bf16 %v983, %v983
    %v1021 = vpack.c.bf16 %v987, %v987
    %v1022 = vpack.c.bf16 %v991, %v991
    %v1023 = vpack.c.bf16 %v995, %v995
    %v1024 = vpack.c.bf16 %v999, %v999
    %v1025 = vpack.c.bf16 %v1003, %v1003
    %v1026 = vpack.c.bf16 %v1007, %v1007
    %v1027 = vpack.c.bf16 %v1011, %v1011
    %v1029 = vpack.i.b16 %v1020, %v1020
    %v1031 = vlaneseq
    %v1032 = vshrl.u32 %v1031, 7
    %v1033 = vsub.s32 0, %v1032
    %v1034 = vrot.slane %v1029, %v1033
    %v1036 = vpack.i.b16 %v1021, %v1021
    %v1038 = vlaneseq
    %v1039 = vshrl.u32 %v1038, 7
    %v1040 = vsub.s32 0, %v1039
    %v1041 = vrot.slane %v1036, %v1040
    %v1043 = vpack.i.b16 %v1022, %v1022
    %v1045 = vlaneseq
    %v1046 = vshrl.u32 %v1045, 7
    %v1047 = vsub.s32 0, %v1046
    %v1048 = vrot.slane %v1043, %v1047
    %v1050 = vpack.i.b16 %v1023, %v1023
    %v1052 = vlaneseq
    %v1053 = vshrl.u32 %v1052, 7
    %v1054 = vsub.s32 0, %v1053
    %v1055 = vrot.slane %v1050, %v1054
    %v1057 = vpack.i.b16 %v1024, %v1024
    %v1059 = vlaneseq
    %v1060 = vshrl.u32 %v1059, 7
    %v1061 = vsub.s32 0, %v1060
    %v1062 = vrot.slane %v1057, %v1061
    %v1064 = vpack.i.b16 %v1025, %v1025
    %v1066 = vlaneseq
    %v1067 = vshrl.u32 %v1066, 7
    %v1068 = vsub.s32 0, %v1067
    %v1069 = vrot.slane %v1064, %v1068
    %v1071 = vpack.i.b16 %v1026, %v1026
    %v1073 = vlaneseq
    %v1074 = vshrl.u32 %v1073, 7
    %v1075 = vsub.s32 0, %v1074
    %v1076 = vrot.slane %v1071, %v1075
    %v1078 = vpack.i.b16 %v1027, %v1027
    %v1080 = vlaneseq
    %v1081 = vshrl.u32 %v1080, 7
    %v1082 = vsub.s32 0, %v1081
    %v1083 = vrot.slane %v1078, %v1082
    %v1084 = vsub.bf16 %v977, %v1034
    %v1085 = vsub.bf16 %v977, %v1041
    %v1086 = vsub.bf16 %v977, %v1048
    %v1087 = vsub.bf16 %v977, %v1055
    %v1088 = vsub.bf16 %v977, %v1062
    %v1089 = vsub.bf16 %v977, %v1069
    %v1090 = vsub.bf16 %v977, %v1076
    %v1091 = vsub.bf16 %v977, %v1083
    %v1092 = vtanh.bf16.pop %v1084
    %v1093 = vtanh.bf16.pop %v1085
    %v1094 = vtanh.bf16.pop %v1086
    %v1095 = vtanh.bf16.pop %v1087
    %v1096 = vtanh.bf16.pop %v1088
    %v1097 = vtanh.bf16.pop %v1089
    %v1098 = vtanh.bf16.pop %v1090
    %v1099 = vtanh.bf16.pop %v1091
    %v1100 = vmul.bf16 %v1092, %v1092
    %v1101 = vmul.bf16 %v1093, %v1093
    %v1102 = vmul.bf16 %v1094, %v1094
    %v1103 = vmul.bf16 %v1095, %v1095
    %v1104 = vmul.bf16 %v1096, %v1096
    %v1105 = vmul.bf16 %v1097, %v1097
    %v1106 = vmul.bf16 %v1098, %v1098
    %v1107 = vmul.bf16 %v1099, %v1099
    %v1108 = vsub.bf16 1065369472, %v1100
    %v1109 = vsub.bf16 1065369472, %v1101
    %v1110 = vsub.bf16 1065369472, %v1102
    %v1111 = vsub.bf16 1065369472, %v1103
    %v1112 = vsub.bf16 1065369472, %v1104
    %v1113 = vsub.bf16 1065369472, %v1105
    %v1114 = vsub.bf16 1065369472, %v1106
    %v1115 = vsub.bf16 1065369472, %v1107
    %v1116 = vld [vmem:[#allocation8] sm:$0xf]
    %v1117 = vld [vmem:[#allocation8 + $0x4] sm:$0xf]
    %v1118 = vld [vmem:[#allocation8 + $0x8] sm:$0xf]
    %v1119 = vld [vmem:[#allocation8 + $0xc] sm:$0xf]
    %v1120 = vld [vmem:[#allocation8 + $0x10] sm:$0xf]
    %v1121 = vld [vmem:[#allocation8 + $0x14] sm:$0xf]
    %v1122 = vld [vmem:[#allocation8 + $0x18] sm:$0xf]
    %v1123 = vld [vmem:[#allocation8 + $0x1c] sm:$0xf]
    %v1124 = vld [vmem:[#allocation8 + $0x20] sm:$0xf]
    %v1125 = vld [vmem:[#allocation8 + $0x24] sm:$0xf]
    %v1126 = vld [vmem:[#allocation8 + $0x28] sm:$0xf]
    %v1127 = vld [vmem:[#allocation8 + $0x2c] sm:$0xf]
    %v1128 = vld [vmem:[#allocation8 + $0x30] sm:$0xf]
    %v1129 = vld [vmem:[#allocation8 + $0x34] sm:$0xf]
    %v1130 = vld [vmem:[#allocation8 + $0x38] sm:$0xf]
    %v1131 = vld [vmem:[#allocation8 + $0x3c] sm:$0xf]
    %v1132 = vld [vmem:[#allocation8 + $0x40] sm:$0xf]
    %v1133 = vld [vmem:[#allocation8 + $0x44] sm:$0xf]
    %v1134 = vld [vmem:[#allocation8 + $0x48] sm:$0xf]
    %v1135 = vld [vmem:[#allocation8 + $0x4c] sm:$0xf]
    %v1136 = vld [vmem:[#allocation8 + $0x50] sm:$0xf]
    %v1137 = vld [vmem:[#allocation8 + $0x54] sm:$0xf]
    %v1138 = vld [vmem:[#allocation8 + $0x58] sm:$0xf]
    %v1139 = vld [vmem:[#allocation8 + $0x5c] sm:$0xf]
    %v1140 = vld [vmem:[#allocation8 + $0x60] sm:$0xf]
    %v1141 = vld [vmem:[#allocation8 + $0x64] sm:$0xf]
    %v1142 = vld [vmem:[#allocation8 + $0x68] sm:$0xf]
    %v1143 = vld [vmem:[#allocation8 + $0x6c] sm:$0xf]
    %v1144 = vld [vmem:[#allocation8 + $0x70] sm:$0xf]
    %v1145 = vld [vmem:[#allocation8 + $0x74] sm:$0xf]
    %v1146 = vld [vmem:[#allocation8 + $0x78] sm:$0xf]
    %v1147 = vld [vmem:[#allocation8 + $0x7c] sm:$0xf]
    %v1148 = vld [vmem:[#allocation8 + $0x80] sm:$0xf]
    %v1149 = vld [vmem:[#allocation8 + $0x84] sm:$0xf]
    %v1150 = vld [vmem:[#allocation8 + $0x88] sm:$0xf]
    %v1151 = vld [vmem:[#allocation8 + $0x8c] sm:$0xf]
    %v1152 = vld [vmem:[#allocation8 + $0x90] sm:$0xf]
    %v1153 = vld [vmem:[#allocation8 + $0x94] sm:$0xf]
    %v1154 = vld [vmem:[#allocation8 + $0x98] sm:$0xf]
    %v1155 = vld [vmem:[#allocation8 + $0x9c] sm:$0xf]
    %v1156 = vld [vmem:[#allocation8 + $0xa0] sm:$0xf]
    %v1157 = vld [vmem:[#allocation8 + $0xa4] sm:$0xf]
    %v1158 = vld [vmem:[#allocation8 + $0xa8] sm:$0xf]
    %v1159 = vld [vmem:[#allocation8 + $0xac] sm:$0xf]
    %v1160 = vld [vmem:[#allocation8 + $0xb0] sm:$0xf]
    %v1161 = vld [vmem:[#allocation8 + $0xb4] sm:$0xf]
    %v1162 = vld [vmem:[#allocation8 + $0xb8] sm:$0xf]
    %v1163 = vld [vmem:[#allocation8 + $0xbc] sm:$0xf]
    %v1164 = vld [vmem:[#allocation8 + $0xc0] sm:$0xf]
    %v1165 = vld [vmem:[#allocation8 + $0xc4] sm:$0xf]
    %v1166 = vld [vmem:[#allocation8 + $0xc8] sm:$0xf]
    %v1167 = vld [vmem:[#allocation8 + $0xcc] sm:$0xf]
    %v1168 = vld [vmem:[#allocation8 + $0xd0] sm:$0xf]
    %v1169 = vld [vmem:[#allocation8 + $0xd4] sm:$0xf]
    %v1170 = vld [vmem:[#allocation8 + $0xd8] sm:$0xf]
    %v1171 = vld [vmem:[#allocation8 + $0xdc] sm:$0xf]
    %v1172 = vld [vmem:[#allocation8 + $0xe0] sm:$0xf]
    %v1173 = vld [vmem:[#allocation8 + $0xe4] sm:$0xf]
    %v1174 = vld [vmem:[#allocation8 + $0xe8] sm:$0xf]
    %v1175 = vld [vmem:[#allocation8 + $0xec] sm:$0xf]
    %v1176 = vld [vmem:[#allocation8 + $0xf0] sm:$0xf]
    %v1177 = vld [vmem:[#allocation8 + $0xf4] sm:$0xf]
    %v1178 = vld [vmem:[#allocation8 + $0xf8] sm:$0xf]
    %v1179 = vld [vmem:[#allocation8 + $0xfc] sm:$0xf]
    %v1180 = vld [vmem:[#allocation8 + $0x100] sm:$0xf]
    %v1181 = vld [vmem:[#allocation8 + $0x104] sm:$0xf]
    %v1182 = vld [vmem:[#allocation8 + $0x108] sm:$0xf]
    %v1183 = vld [vmem:[#allocation8 + $0x10c] sm:$0xf]
    %v1184 = vld [vmem:[#allocation8 + $0x110] sm:$0xf]
    %v1185 = vld [vmem:[#allocation8 + $0x114] sm:$0xf]
    %v1186 = vld [vmem:[#allocation8 + $0x118] sm:$0xf]
    %v1187 = vld [vmem:[#allocation8 + $0x11c] sm:$0xf]
    %v1188 = vld [vmem:[#allocation8 + $0x120] sm:$0xf]
    %v1189 = vld [vmem:[#allocation8 + $0x124] sm:$0xf]
    %v1190 = vld [vmem:[#allocation8 + $0x128] sm:$0xf]
    %v1191 = vld [vmem:[#allocation8 + $0x12c] sm:$0xf]
    %v1192 = vld [vmem:[#allocation8 + $0x130] sm:$0xf]
    %v1193 = vld [vmem:[#allocation8 + $0x134] sm:$0xf]
    %v1194 = vld [vmem:[#allocation8 + $0x138] sm:$0xf]
    %v1195 = vld [vmem:[#allocation8 + $0x13c] sm:$0xf]
    %v1196 = vld [vmem:[#allocation8 + $0x140] sm:$0xf]
    %v1197 = vld [vmem:[#allocation8 + $0x144] sm:$0xf]
    %v1198 = vld [vmem:[#allocation8 + $0x148] sm:$0xf]
    %v1199 = vld [vmem:[#allocation8 + $0x14c] sm:$0xf]
    %v1200 = vld [vmem:[#allocation8 + $0x150] sm:$0xf]
    %v1201 = vld [vmem:[#allocation8 + $0x154] sm:$0xf]
    %v1202 = vld [vmem:[#allocation8 + $0x158] sm:$0xf]
    %v1203 = vld [vmem:[#allocation8 + $0x15c] sm:$0xf]
    %v1204 = vld [vmem:[#allocation8 + $0x160] sm:$0xf]
    %v1205 = vld [vmem:[#allocation8 + $0x164] sm:$0xf]
    %v1206 = vld [vmem:[#allocation8 + $0x168] sm:$0xf]
    %v1207 = vld [vmem:[#allocation8 + $0x16c] sm:$0xf]
    %v1208 = vld [vmem:[#allocation8 + $0x170] sm:$0xf]
    %v1209 = vld [vmem:[#allocation8 + $0x174] sm:$0xf]
    %v1210 = vld [vmem:[#allocation8 + $0x178] sm:$0xf]
    %v1211 = vld [vmem:[#allocation8 + $0x17c] sm:$0xf]
    %v1212 = vld [vmem:[#allocation8 + $0x180] sm:$0xf]
    %v1213 = vld [vmem:[#allocation8 + $0x184] sm:$0xf]
    %v1214 = vld [vmem:[#allocation8 + $0x188] sm:$0xf]
    %v1215 = vld [vmem:[#allocation8 + $0x18c] sm:$0xf]
    %v1216 = vld [vmem:[#allocation8 + $0x190] sm:$0xf]
    %v1217 = vld [vmem:[#allocation8 + $0x194] sm:$0xf]
    %v1218 = vld [vmem:[#allocation8 + $0x198] sm:$0xf]
    %v1219 = vld [vmem:[#allocation8 + $0x19c] sm:$0xf]
    %v1220 = vld [vmem:[#allocation8 + $0x1a0] sm:$0xf]
    %v1221 = vld [vmem:[#allocation8 + $0x1a4] sm:$0xf]
    %v1222 = vld [vmem:[#allocation8 + $0x1a8] sm:$0xf]
    %v1223 = vld [vmem:[#allocation8 + $0x1ac] sm:$0xf]
    %v1224 = vld [vmem:[#allocation8 + $0x1b0] sm:$0xf]
    %v1225 = vld [vmem:[#allocation8 + $0x1b4] sm:$0xf]
    %v1226 = vld [vmem:[#allocation8 + $0x1b8] sm:$0xf]
    %v1227 = vld [vmem:[#allocation8 + $0x1bc] sm:$0xf]
    %v1228 = vld [vmem:[#allocation8 + $0x1c0] sm:$0xf]
    %v1229 = vld [vmem:[#allocation8 + $0x1c4] sm:$0xf]
    %v1230 = vld [vmem:[#allocation8 + $0x1c8] sm:$0xf]
    %v1231 = vld [vmem:[#allocation8 + $0x1cc] sm:$0xf]
    %v1232 = vld [vmem:[#allocation8 + $0x1d0] sm:$0xf]
    %v1233 = vld [vmem:[#allocation8 + $0x1d4] sm:$0xf]
    %v1234 = vld [vmem:[#allocation8 + $0x1d8] sm:$0xf]
    %v1235 = vld [vmem:[#allocation8 + $0x1dc] sm:$0xf]
    %v1236 = vld [vmem:[#allocation8 + $0x1e0] sm:$0xf]
    %v1237 = vld [vmem:[#allocation8 + $0x1e4] sm:$0xf]
    %v1238 = vld [vmem:[#allocation8 + $0x1e8] sm:$0xf]
    %v1239 = vld [vmem:[#allocation8 + $0x1ec] sm:$0xf]
    %v1240 = vld [vmem:[#allocation8 + $0x1f0] sm:$0xf]
    %v1241 = vld [vmem:[#allocation8 + $0x1f4] sm:$0xf]
    %v1242 = vld [vmem:[#allocation8 + $0x1f8] sm:$0xf]
    %v1243 = vld [vmem:[#allocation8 + $0x1fc] sm:$0xf]
    %v1372 = vunpack.c.l.b16 %v1116
    %v1373 = vunpack.c.l.b16 %v1117
    %v1374 = vunpack.c.l.b16 %v1118
    %v1375 = vunpack.c.l.b16 %v1119
    %v1376 = vunpack.c.l.b16 %v1120
    %v1377 = vunpack.c.l.b16 %v1121
    %v1378 = vunpack.c.l.b16 %v1122
    %v1379 = vunpack.c.l.b16 %v1123
    %v1380 = vunpack.c.l.b16 %v1124
    %v1381 = vunpack.c.l.b16 %v1125
    %v1382 = vunpack.c.l.b16 %v1126
    %v1383 = vunpack.c.l.b16 %v1127
    %v1384 = vunpack.c.l.b16 %v1128
    %v1385 = vunpack.c.l.b16 %v1129
    %v1386 = vunpack.c.l.b16 %v1130
    %v1387 = vunpack.c.l.b16 %v1131
    %v1388 = vunpack.c.l.b16 %v1132
    %v1389 = vunpack.c.l.b16 %v1133
    %v1390 = vunpack.c.l.b16 %v1134
    %v1391 = vunpack.c.l.b16 %v1135
    %v1392 = vunpack.c.l.b16 %v1136
    %v1393 = vunpack.c.l.b16 %v1137
    %v1394 = vunpack.c.l.b16 %v1138
    %v1395 = vunpack.c.l.b16 %v1139
    %v1396 = vunpack.c.l.b16 %v1140
    %v1397 = vunpack.c.l.b16 %v1141
    %v1398 = vunpack.c.l.b16 %v1142
    %v1399 = vunpack.c.l.b16 %v1143
    %v1400 = vunpack.c.l.b16 %v1144
    %v1401 = vunpack.c.l.b16 %v1145
    %v1402 = vunpack.c.l.b16 %v1146
    %v1403 = vunpack.c.l.b16 %v1147
    %v1404 = vunpack.c.l.b16 %v1148
    %v1405 = vunpack.c.l.b16 %v1149
    %v1406 = vunpack.c.l.b16 %v1150
    %v1407 = vunpack.c.l.b16 %v1151
    %v1408 = vunpack.c.l.b16 %v1152
    %v1409 = vunpack.c.l.b16 %v1153
    %v1410 = vunpack.c.l.b16 %v1154
    %v1411 = vunpack.c.l.b16 %v1155
    %v1412 = vunpack.c.l.b16 %v1156
    %v1413 = vunpack.c.l.b16 %v1157
    %v1414 = vunpack.c.l.b16 %v1158
    %v1415 = vunpack.c.l.b16 %v1159
    %v1416 = vunpack.c.l.b16 %v1160
    %v1417 = vunpack.c.l.b16 %v1161
    %v1418 = vunpack.c.l.b16 %v1162
    %v1419 = vunpack.c.l.b16 %v1163
    %v1420 = vunpack.c.l.b16 %v1164
    %v1421 = vunpack.c.l.b16 %v1165
    %v1422 = vunpack.c.l.b16 %v1166
    %v1423 = vunpack.c.l.b16 %v1167
    %v1424 = vunpack.c.l.b16 %v1168
    %v1425 = vunpack.c.l.b16 %v1169
    %v1426 = vunpack.c.l.b16 %v1170
    %v1427 = vunpack.c.l.b16 %v1171
    %v1428 = vunpack.c.l.b16 %v1172
    %v1429 = vunpack.c.l.b16 %v1173
    %v1430 = vunpack.c.l.b16 %v1174
    %v1431 = vunpack.c.l.b16 %v1175
    %v1432 = vunpack.c.l.b16 %v1176
    %v1433 = vunpack.c.l.b16 %v1177
    %v1434 = vunpack.c.l.b16 %v1178
    %v1435 = vunpack.c.l.b16 %v1179
    %v1436 = vunpack.c.l.b16 %v1180
    %v1437 = vunpack.c.l.b16 %v1181
    %v1438 = vunpack.c.l.b16 %v1182
    %v1439 = vunpack.c.l.b16 %v1183
    %v1440 = vunpack.c.l.b16 %v1184
    %v1441 = vunpack.c.l.b16 %v1185
    %v1442 = vunpack.c.l.b16 %v1186
    %v1443 = vunpack.c.l.b16 %v1187
    %v1444 = vunpack.c.l.b16 %v1188
    %v1445 = vunpack.c.l.b16 %v1189
    %v1446 = vunpack.c.l.b16 %v1190
    %v1447 = vunpack.c.l.b16 %v1191
    %v1448 = vunpack.c.l.b16 %v1192
    %v1449 = vunpack.c.l.b16 %v1193
    %v1450 = vunpack.c.l.b16 %v1194
    %v1451 = vunpack.c.l.b16 %v1195
    %v1452 = vunpack.c.l.b16 %v1196
    %v1453 = vunpack.c.l.b16 %v1197
    %v1454 = vunpack.c.l.b16 %v1198
    %v1455 = vunpack.c.l.b16 %v1199
    %v1456 = vunpack.c.l.b16 %v1200
    %v1457 = vunpack.c.l.b16 %v1201
    %v1458 = vunpack.c.l.b16 %v1202
    %v1459 = vunpack.c.l.b16 %v1203
    %v1460 = vunpack.c.l.b16 %v1204
    %v1461 = vunpack.c.l.b16 %v1205
    %v1462 = vunpack.c.l.b16 %v1206
    %v1463 = vunpack.c.l.b16 %v1207
    %v1464 = vunpack.c.l.b16 %v1208
    %v1465 = vunpack.c.l.b16 %v1209
    %v1466 = vunpack.c.l.b16 %v1210
    %v1467 = vunpack.c.l.b16 %v1211
    %v1468 = vunpack.c.l.b16 %v1212
    %v1469 = vunpack.c.l.b16 %v1213
    %v1470 = vunpack.c.l.b16 %v1214
    %v1471 = vunpack.c.l.b16 %v1215
    %v1472 = vunpack.c.l.b16 %v1216
    %v1473 = vunpack.c.l.b16 %v1217
    %v1474 = vunpack.c.l.b16 %v1218
    %v1475 = vunpack.c.l.b16 %v1219
    %v1476 = vunpack.c.l.b16 %v1220
    %v1477 = vunpack.c.l.b16 %v1221
    %v1478 = vunpack.c.l.b16 %v1222
    %v1479 = vunpack.c.l.b16 %v1223
    %v1480 = vunpack.c.l.b16 %v1224
    %v1481 = vunpack.c.l.b16 %v1225
    %v1482 = vunpack.c.l.b16 %v1226
    %v1483 = vunpack.c.l.b16 %v1227
    %v1484 = vunpack.c.l.b16 %v1228
    %v1485 = vunpack.c.l.b16 %v1229
    %v1486 = vunpack.c.l.b16 %v1230
    %v1487 = vunpack.c.l.b16 %v1231
    %v1488 = vunpack.c.l.b16 %v1232
    %v1489 = vunpack.c.l.b16 %v1233
    %v1490 = vunpack.c.l.b16 %v1234
    %v1491 = vunpack.c.l.b16 %v1235
    %v1492 = vunpack.c.l.b16 %v1236
    %v1493 = vunpack.c.l.b16 %v1237
    %v1494 = vunpack.c.l.b16 %v1238
    %v1495 = vunpack.c.l.b16 %v1239
    %v1496 = vunpack.c.l.b16 %v1240
    %v1497 = vunpack.c.l.b16 %v1241
    %v1498 = vunpack.c.l.b16 %v1242
    %v1499 = vunpack.c.l.b16 %v1243
    %v1500 = vpack.c.b16 %v1373, %v1372
    %v1501 = vpack.c.b16 %v1375, %v1374
    %v1502 = vpack.c.b16 %v1377, %v1376
    %v1503 = vpack.c.b16 %v1379, %v1378
    %v1504 = vpack.c.b16 %v1381, %v1380
    %v1505 = vpack.c.b16 %v1383, %v1382
    %v1506 = vpack.c.b16 %v1385, %v1384
    %v1507 = vpack.c.b16 %v1387, %v1386
    %v1508 = vpack.c.b16 %v1389, %v1388
    %v1509 = vpack.c.b16 %v1391, %v1390
    %v1510 = vpack.c.b16 %v1393, %v1392
    %v1511 = vpack.c.b16 %v1395, %v1394
    %v1512 = vpack.c.b16 %v1397, %v1396
    %v1513 = vpack.c.b16 %v1399, %v1398
    %v1514 = vpack.c.b16 %v1401, %v1400
    %v1515 = vpack.c.b16 %v1403, %v1402
    %v1516 = vpack.c.b16 %v1405, %v1404
    %v1517 = vpack.c.b16 %v1407, %v1406
    %v1518 = vpack.c.b16 %v1409, %v1408
    %v1519 = vpack.c.b16 %v1411, %v1410
    %v1520 = vpack.c.b16 %v1413, %v1412
    %v1521 = vpack.c.b16 %v1415, %v1414
    %v1522 = vpack.c.b16 %v1417, %v1416
    %v1523 = vpack.c.b16 %v1419, %v1418
    %v1524 = vpack.c.b16 %v1421, %v1420
    %v1525 = vpack.c.b16 %v1423, %v1422
    %v1526 = vpack.c.b16 %v1425, %v1424
    %v1527 = vpack.c.b16 %v1427, %v1426
    %v1528 = vpack.c.b16 %v1429, %v1428
    %v1529 = vpack.c.b16 %v1431, %v1430
    %v1530 = vpack.c.b16 %v1433, %v1432
    %v1531 = vpack.c.b16 %v1435, %v1434
    %v1532 = vpack.c.b16 %v1437, %v1436
    %v1533 = vpack.c.b16 %v1439, %v1438
    %v1534 = vpack.c.b16 %v1441, %v1440
    %v1535 = vpack.c.b16 %v1443, %v1442
    %v1536 = vpack.c.b16 %v1445, %v1444
    %v1537 = vpack.c.b16 %v1447, %v1446
    %v1538 = vpack.c.b16 %v1449, %v1448
    %v1539 = vpack.c.b16 %v1451, %v1450
    %v1540 = vpack.c.b16 %v1453, %v1452
    %v1541 = vpack.c.b16 %v1455, %v1454
    %v1542 = vpack.c.b16 %v1457, %v1456
    %v1543 = vpack.c.b16 %v1459, %v1458
    %v1544 = vpack.c.b16 %v1461, %v1460
    %v1545 = vpack.c.b16 %v1463, %v1462
    %v1546 = vpack.c.b16 %v1465, %v1464
    %v1547 = vpack.c.b16 %v1467, %v1466
    %v1548 = vpack.c.b16 %v1469, %v1468
    %v1549 = vpack.c.b16 %v1471, %v1470
    %v1550 = vpack.c.b16 %v1473, %v1472
    %v1551 = vpack.c.b16 %v1475, %v1474
    %v1552 = vpack.c.b16 %v1477, %v1476
    %v1553 = vpack.c.b16 %v1479, %v1478
    %v1554 = vpack.c.b16 %v1481, %v1480
    %v1555 = vpack.c.b16 %v1483, %v1482
    %v1556 = vpack.c.b16 %v1485, %v1484
    %v1557 = vpack.c.b16 %v1487, %v1486
    %v1558 = vpack.c.b16 %v1489, %v1488
    %v1559 = vpack.c.b16 %v1491, %v1490
    %v1560 = vpack.c.b16 %v1493, %v1492
    %v1561 = vpack.c.b16 %v1495, %v1494
    %v1562 = vpack.c.b16 %v1497, %v1496
    %v1563 = vpack.c.b16 %v1499, %v1498
    %1628 = vmatprep.subr.bf16.mxu0 0
    %1629 = vmatpush1.bf16.msra.mxu0 %v1500
    %1630 = vmatprep.subr.bf16.mxu0 0
    %1631 = vmatpush1.bf16.msra.mxu0 %v1501
    %1632 = vmatprep.subr.bf16.mxu0 0
    %1633 = vmatpush1.bf16.msra.mxu0 %v1502
    %1634 = vmatprep.subr.bf16.mxu0 0
    %1635 = vmatpush1.bf16.msra.mxu0 %v1503
    %1636 = vmatprep.subr.bf16.mxu0 0
    %1637 = vmatpush1.bf16.msra.mxu0 %v1504
    %1638 = vmatprep.subr.bf16.mxu0 0
    %1639 = vmatpush1.bf16.msra.mxu0 %v1505
    %1640 = vmatprep.subr.bf16.mxu0 0
    %1641 = vmatpush1.bf16.msra.mxu0 %v1506
    %1642 = vmatprep.subr.bf16.mxu0 0
    %1643 = vmatpush1.bf16.msra.mxu0 %v1507
    %1644 = vmatprep.subr.bf16.mxu0 0
    %1645 = vmatpush1.bf16.msra.mxu0 %v1508
    %1646 = vmatprep.subr.bf16.mxu0 0
    %1647 = vmatpush1.bf16.msra.mxu0 %v1509
    %1648 = vmatprep.subr.bf16.mxu0 0
    %1649 = vmatpush1.bf16.msra.mxu0 %v1510
    %1650 = vmatprep.subr.bf16.mxu0 0
    %1651 = vmatpush1.bf16.msra.mxu0 %v1511
    %1652 = vmatprep.subr.bf16.mxu0 0
    %1653 = vmatpush1.bf16.msra.mxu0 %v1512
    %1654 = vmatprep.subr.bf16.mxu0 0
    %1655 = vmatpush1.bf16.msra.mxu0 %v1513
    %1656 = vmatprep.subr.bf16.mxu0 0
    %1657 = vmatpush1.bf16.msra.mxu0 %v1514
    %1658 = vmatprep.subr.bf16.mxu0 0
    %1659 = vmatpush1.bf16.msra.mxu0 %v1515
    %1660 = vmatprep.mubr.bf16.mxu0 %v1109
    %1661 = vmatmul.mubr.bf16.gmra.mrb[0].mxu0 %v1108
    %v1662 = vpop.f32.mrb[0].mxu0
    %v1663 = vadd.f32 0.0, %v1662
    %v1664 = vpop.f32.mrb[0].mxu0
    %v1665 = vpop.f32.mrb[0].mxu0
    %v1666 = vadd.f32 0.0, %v1665
    %v1667 = vpop.f32.mrb[0].mxu0
    %1668 = vdwg.mxu0
    %1669 = vmatprep.subr.bf16.mxu0 0
    %1670 = vmatpush1.bf16.msra.mxu0 %v1516
    %1671 = vmatprep.subr.bf16.mxu0 0
    %1672 = vmatpush1.bf16.msra.mxu0 %v1517
    %1673 = vmatprep.subr.bf16.mxu0 0
    %1674 = vmatpush1.bf16.msra.mxu0 %v1518
    %1675 = vmatprep.subr.bf16.mxu0 0
    %1676 = vmatpush1.bf16.msra.mxu0 %v1519
    %1677 = vmatprep.subr.bf16.mxu0 0
    %1678 = vmatpush1.bf16.msra.mxu0 %v1520
    %1679 = vmatprep.subr.bf16.mxu0 0
    %1680 = vmatpush1.bf16.msra.mxu0 %v1521
    %1681 = vmatprep.subr.bf16.mxu0 0
    %1682 = vmatpush1.bf16.msra.mxu0 %v1522
    %1683 = vmatprep.subr.bf16.mxu0 0
    %1684 = vmatpush1.bf16.msra.mxu0 %v1523
    %1685 = vmatprep.subr.bf16.mxu0 0
    %1686 = vmatpush1.bf16.msra.mxu0 %v1524
    %1687 = vmatprep.subr.bf16.mxu0 0
    %1688 = vmatpush1.bf16.msra.mxu0 %v1525
    %1689 = vmatprep.subr.bf16.mxu0 0
    %1690 = vmatpush1.bf16.msra.mxu0 %v1526
    %1691 = vmatprep.subr.bf16.mxu0 0
    %1692 = vmatpush1.bf16.msra.mxu0 %v1527
    %1693 = vmatprep.subr.bf16.mxu0 0
    %1694 = vmatpush1.bf16.msra.mxu0 %v1528
    %1695 = vmatprep.subr.bf16.mxu0 0
    %1696 = vmatpush1.bf16.msra.mxu0 %v1529
    %1697 = vmatprep.subr.bf16.mxu0 0
    %1698 = vmatpush1.bf16.msra.mxu0 %v1530
    %1699 = vmatprep.subr.bf16.mxu0 0
    %1700 = vmatpush1.bf16.msra.mxu0 %v1531
    %1701 = vmatprep.mubr.bf16.mxu0 %v1111
    %1702 = vmatmul.mubr.bf16.gmra.mrb[0].mxu0 %v1110
    %v1703 = vpop.f32.mrb[0].mxu0
    %v1704 = vadd.f32 %v1663, %v1703
    %v1705 = vpop.f32.mrb[0].mxu0
    %v1706 = vpop.f32.mrb[0].mxu0
    %v1707 = vadd.f32 %v1666, %v1706
    %v1708 = vpop.f32.mrb[0].mxu0
    %1709 = vdwg.mxu0
    %1710 = vmatprep.subr.bf16.mxu0 0
    %1711 = vmatpush1.bf16.msra.mxu0 %v1532
    %1712 = vmatprep.subr.bf16.mxu0 0
    %1713 = vmatpush1.bf16.msra.mxu0 %v1533
    %1714 = vmatprep.subr.bf16.mxu0 0
    %1715 = vmatpush1.bf16.msra.mxu0 %v1534
    %1716 = vmatprep.subr.bf16.mxu0 0
    %1717 = vmatpush1.bf16.msra.mxu0 %v1535
    %1718 = vmatprep.subr.bf16.mxu0 0
    %1719 = vmatpush1.bf16.msra.mxu0 %v1536
    %1720 = vmatprep.subr.bf16.mxu0 0
    %1721 = vmatpush1.bf16.msra.mxu0 %v1537
    %1722 = vmatprep.subr.bf16.mxu0 0
    %1723 = vmatpush1.bf16.msra.mxu0 %v1538
    %1724 = vmatprep.subr.bf16.mxu0 0
    %1725 = vmatpush1.bf16.msra.mxu0 %v1539
    %1726 = vmatprep.subr.bf16.mxu0 0
    %1727 = vmatpush1.bf16.msra.mxu0 %v1540
    %1728 = vmatprep.subr.bf16.mxu0 0
    %1729 = vmatpush1.bf16.msra.mxu0 %v1541
    %1730 = vmatprep.subr.bf16.mxu0 0
    %1731 = vmatpush1.bf16.msra.mxu0 %v1542
    %1732 = vmatprep.subr.bf16.mxu0 0
    %1733 = vmatpush1.bf16.msra.mxu0 %v1543
    %1734 = vmatprep.subr.bf16.mxu0 0
    %1735 = vmatpush1.bf16.msra.mxu0 %v1544
    %1736 = vmatprep.subr.bf16.mxu0 0
    %1737 = vmatpush1.bf16.msra.mxu0 %v1545
    %1738 = vmatprep.subr.bf16.mxu0 0
    %1739 = vmatpush1.bf16.msra.mxu0 %v1546
    %1740 = vmatprep.subr.bf16.mxu0 0
    %1741 = vmatpush1.bf16.msra.mxu0 %v1547
    %1742 = vmatprep.mubr.bf16.mxu0 %v1113
    %1743 = vmatmul.mubr.bf16.gmra.mrb[0].mxu0 %v1112
    %v1744 = vpop.f32.mrb[0].mxu0
    %v1745 = vadd.f32 %v1704, %v1744
    %v1746 = vpop.f32.mrb[0].mxu0
    %v1747 = vpop.f32.mrb[0].mxu0
    %v1748 = vadd.f32 %v1707, %v1747
    %v1749 = vpop.f32.mrb[0].mxu0
    %1750 = vdwg.mxu0
    %1751 = vmatprep.subr.bf16.mxu0 0
    %1752 = vmatpush1.bf16.msra.mxu0 %v1548
    %1753 = vmatprep.subr.bf16.mxu0 0
    %1754 = vmatpush1.bf16.msra.mxu0 %v1549
    %1755 = vmatprep.subr.bf16.mxu0 0
    %1756 = vmatpush1.bf16.msra.mxu0 %v1550
    %1757 = vmatprep.subr.bf16.mxu0 0
    %1758 = vmatpush1.bf16.msra.mxu0 %v1551
    %1759 = vmatprep.subr.bf16.mxu0 0
    %1760 = vmatpush1.bf16.msra.mxu0 %v1552
    %1761 = vmatprep.subr.bf16.mxu0 0
    %1762 = vmatpush1.bf16.msra.mxu0 %v1553
    %1763 = vmatprep.subr.bf16.mxu0 0
    %1764 = vmatpush1.bf16.msra.mxu0 %v1554
    %1765 = vmatprep.subr.bf16.mxu0 0
    %1766 = vmatpush1.bf16.msra.mxu0 %v1555
    %1767 = vmatprep.subr.bf16.mxu0 0
    %1768 = vmatpush1.bf16.msra.mxu0 %v1556
    %1769 = vmatprep.subr.bf16.mxu0 0
    %1770 = vmatpush1.bf16.msra.mxu0 %v1557
    %1771 = vmatprep.subr.bf16.mxu0 0
    %1772 = vmatpush1.bf16.msra.mxu0 %v1558
    %1773 = vmatprep.subr.bf16.mxu0 0
    %1774 = vmatpush1.bf16.msra.mxu0 %v1559
    %1775 = vmatprep.subr.bf16.mxu0 0
    %1776 = vmatpush1.bf16.msra.mxu0 %v1560
    %1777 = vmatprep.subr.bf16.mxu0 0
    %1778 = vmatpush1.bf16.msra.mxu0 %v1561
    %1779 = vmatprep.subr.bf16.mxu0 0
    %1780 = vmatpush1.bf16.msra.mxu0 %v1562
    %1781 = vmatprep.subr.bf16.mxu0 0
    %1782 = vmatpush1.bf16.msra.mxu0 %v1563
    %1783 = vmatprep.mubr.bf16.mxu0 %v1115
    %1784 = vmatmul.mubr.bf16.gmra.mrb[0].mxu0 %v1114
    %v1785 = vpop.f32.mrb[0].mxu0
    %v1786 = vadd.f32 %v1745, %v1785
    %v1787 = vpop.f32.mrb[0].mxu0
    %v1788 = vpop.f32.mrb[0].mxu0
    %v1789 = vadd.f32 %v1748, %v1788
    %v1790 = vpop.f32.mrb[0].mxu0
    %1791 = vdwg.mxu0
    %v1792 = vpack.c.bf16 %v1789, %v1786
    %v1794 = vunpack.c.l.b16 %v1792
    %v1795 = vunpack.c.h.b16 %v1792
    %v1796 = vpack.c.b16 %v1794, %v1794
    %v1797 = vpack.c.b16 %v1795, %v1795
    %1800 = vst [vmem:[#allocation10] sm:$0xf] %v1796
    %1801 = vst [vmem:[#allocation10 + $0x4] sm:$0xf] %v1797
    // Predicated region
    $region46: #{tpu_custom_call.1} parent=1 // pred_check
      _
    $region47: #{tpu_custom_call.1} parent=1 // pred_check_branch
      %1803 = sbr.rel (0) target = $region49
    $region48: #{tpu_custom_call.1} parent=1 // pred_region
      %s1805 = ssub.s32 128, 128
      %1806 = vsyncadd [#allocation4], %s1805
      %s1807 = sshll.u32 [#allocation10], 4
      %s1808 = int_to_ptr.vmem [resolvable:$true] %s1807
      %1813 = dma.vmem_to_hbm [thread:$0]  %s1808, 128, %s7, [#allocation4], 64, 64, 4
    $region49: #{tpu_custom_call.1} parent=1 // pred_fallthru
      _
    // Predicated region
    $region50: #{tpu_custom_call.1} parent=1 // pred_check
      _
    $region51: #{tpu_custom_call.1} parent=1 // pred_check_branch
      %1815 = sbr.rel (0) target = $region53
    $region52: #{tpu_custom_call.1} parent=1 // pred_region
      %1816 = dma.done [#allocation4], 128
    $region53: #{tpu_custom_call.1} parent=1 // pred_fallthru
      _
    %1817 = vsyncpa [#allocation3], 1
    %1818 = vsyncpa [#allocation6], 1
    %1819 = vsyncpa [#allocation9], 1
    %1820 = vsyncpa [#allocation4], 1

</llo_original>
